<compile_context>
chip_gen: v5e
topology: v5e:2x2
jax: 0.10.0
libtpu: 0.0.40
codegen_flags: <defaults>
</compile_context>

<pallas_src>
import functools

import numpy as np
import jax
import jax.numpy as jnp
from jax import lax
from jax.experimental import pallas as pl
from jax.experimental.pallas import tpu as pltpu


# ------------------------------ fused kernel ---------------------------------


def _audio_embedding_kernel(
    x_ref,
    m1_ref, s1_ref, t1_ref,
    m2_ref, s2_ref, t2_ref,
    m3_ref, s3_ref, t3_ref,
    w1_ref, b1_ref, w2_ref, b2_ref,
    o_ref,
    pad1_sc, im1_sc, pad2_sc, im2_sc, pad3_sc, im3_sc, flat_sc,
    *, batch, conv_geom,
):
  """Whole AudioEmbedding forward; every operand is VMEM resident.

  Activations live on lane-dense (B*H, W*C) slabs (W*C == 128 for every conv
  output at this configuration).  Each conv layer is ONE MXU contraction
  against a lane-concatenated "W-Toeplitz" weight; the strided H-tap gather is
  KH strided-sublane copies from a zero-padded scratch (im2row), not matmuls.
  """

  def conv_bn_relu(act, pad_sc, im_sc, m_ref, s_ref, t_ref, geom):
    # act   : (B*Hin, Win*Cin)      f32 lane-dense activation slab (register)
    # m_ref : (KH*Win*Cin, Wo*Cout) bf16 im2row weight (W zero-padding folded)
    # s/t   : (1, Wo*Cout)          f32 folded BN scale/shift (+ conv bias)
    hin, pad, kh_n, ho = geom
    hp = hin + 2 * pad
    wc = act.shape[1]

    # H zero-padding in a VMEM scratch (W padding is folded into m_ref).
    pad_sc[...] = jnp.zeros(pad_sc.shape, pad_sc.dtype)
    for bb in range(batch):
      pad_sc[bb * hp + pad:bb * hp + pad + hin, :] = (
          act[bb * hin:(bb + 1) * hin, :])

    # im2row: KH strided-sublane copies; im2row row (b, oh), tap kh  <-
    # padded row b*Hp + 2*oh + kh (stride 2 via pl.ds).
    for bb in range(batch):
      for kh in range(kh_n):
        im_sc[bb * ho:(bb + 1) * ho, kh * wc:(kh + 1) * wc] = (
            pad_sc[pl.ds(bb * hp + kh, ho, stride=2), :])

    # One MXU contraction per layer (bf16 operands, f32 accumulation), then
    # folded BatchNorm + conv bias + ReLU on the VPU, kept in f32 (v5e has no
    # bf16 VPU path).
    acc = jnp.dot(im_sc[...].astype(jnp.bfloat16), m_ref[...],
                  preferred_element_type=jnp.float32)
    return jnp.maximum(acc * s_ref[...] + t_ref[...], 0.0)

  # Conv2d(1,16,5,s2,p2)+BN+ReLU -> Conv2d(16,32,3,s2,p1)+BN+ReLU
  # -> Conv2d(32,64,3,s2,p1)+BN+ReLU.
  y = conv_bn_relu(x_ref[...], pad1_sc, im1_sc, m1_ref, s1_ref, t1_ref,
                   conv_geom[0])
  y = conv_bn_relu(y, pad2_sc, im2_sc, m2_ref, s2_ref, t2_ref, conv_geom[1])
  y = conv_bn_relu(y, pad3_sc, im3_sc, m3_ref, s3_ref, t3_ref, conv_geom[2])

  # nn.Flatten: lane-concatenate the h3 conv3 rows of each batch element into a
  # (B, h3*w3*c3) slab; the PyTorch NCHW flatten permutation is folded into the
  # rows of w1_ref, so the first Linear is a single matmul.
  h3 = conv_geom[2][3]
  wc3 = y.shape[1]
  for bb in range(batch):
    for oh in range(h3):
      flat_sc[bb:bb + 1, oh * wc3:(oh + 1) * wc3] = (
          y[bb * h3 + oh:bb * h3 + oh + 1, :])

  hid = jnp.dot(flat_sc[...].astype(jnp.bfloat16), w1_ref[...],
                preferred_element_type=jnp.float32)
  hid = jnp.maximum(hid + b1_ref[...], 0.0)
  # Dropout(0.3) is the identity in eval mode.
  # TODO(synk): training-mode dropout would use pltpu.prng_seed/prng_random_bits.
  o_ref[...] = (jnp.dot(hid, w2_ref[...], preferred_element_type=jnp.float32)
                + b2_ref[...])


# ------------------------------ wrapper ---------------------------------------


def _full_spec(a):
  nd = a.ndim
  return pl.BlockSpec(a.shape, lambda i, _nd=nd: (0,) * _nd)


@jax.jit
def audio_embedding_forward(x, kp):
  """x: (B, H, W) float32 spectrogram (the PyTorch forward does unsqueeze(1)).

  kp: batch-size-independent constants built once by prepare_kernel_params.
  """
  b, h, w = x.shape
  ho1, ho2, ho3 = h // 2, h // 4, h // 8
  wo1, wo2, wo3 = w // 2, w // 4, w // 8
  wc0, wc1, wc2, wc3 = w, wo1 * 16, wo2 * 32, wo3 * 64
  hidden = kp["w1f"].shape[1]
  emb = kp["w2"].shape[1]

  operands = (
      x.reshape(b * h, w),                 # free row-major reshape (Cin == 1)
      kp["m1"], kp["s1"], kp["t1"],
      kp["m2"], kp["s2"], kp["t2"],
      kp["m3"], kp["s3"], kp["t3"],
      kp["w1f"], kp["b1"], kp["w2"], kp["b2"],
  )

  kernel = functools.partial(
      _audio_embedding_kernel,
      batch=b,
      conv_geom=((h, 2, 5, ho1), (ho1, 1, 3, ho2), (ho2, 1, 3, ho3)))

  flops = 2 * (b * ho1 * (5 * wc0) * wc1 +
               b * ho2 * (3 * wc1) * wc2 +
               b * ho3 * (3 * wc2) * wc3 +
               b * (ho3 * wc3) * hidden +
               b * hidden * emb)
  bytes_accessed = int(sum(int(np.prod(op.shape)) * op.dtype.itemsize
                           for op in operands) + b * emb * 4)

  return pl.pallas_call(
      kernel,
      out_shape=jax.ShapeDtypeStruct((b, emb), jnp.float32),
      grid=(1,),
      in_specs=[_full_spec(op) for op in operands],
      out_specs=pl.BlockSpec((b, emb), lambda i: (0, 0)),
      scratch_shapes=[
          pltpu.VMEM((b * (h + 4), wc0), jnp.float32),      # pad1 (Cin == 1)
          pltpu.VMEM((b * ho1, 5 * wc0), jnp.float32),      # im2row conv1
          pltpu.VMEM((b * (ho1 + 2), wc1), jnp.float32),    # pad2
          pltpu.VMEM((b * ho2, 3 * wc1), jnp.float32),      # im2row conv2
          pltpu.VMEM((b * (ho2 + 2), wc2), jnp.float32),    # pad3
          pltpu.VMEM((b * ho3, 3 * wc2), jnp.float32),      # im2row conv3
          pltpu.VMEM((b, ho3 * wc3), jnp.float32),          # flatten slab
      ],
      compiler_params=pltpu.CompilerParams(
          dimension_semantics=("arbitrary",),
          # Right-sized for the toy problem (~2 MiB resident incl. double
          # buffering); recompute with headroom for production shapes.
          vmem_limit_bytes=8 * 1024 * 1024),
      cost_estimate=pl.CostEstimate(
          flops=flops, transcendentals=0, bytes_accessed=bytes_accessed),
  )(*operands)


# ------------------------ one-time parameter folding --------------------------


def _conv_out(n, k, stride, pad):
  return (n + 2 * pad - k) // stride + 1


def _im2row_weight(w_hwio, win, wo, stride, pad):
  """(KH*Win*Cin, Wo*Cout) weight folding the (kw, Cin)->(ow, Cout) part of a
  stride-2 conv (W zero-padding folded in); K rows ordered (kh, w_in, cin) to
  match the in-kernel im2row lane concatenation."""
  kh_n, kw_n, cin, cout = w_hwio.shape
  m = np.zeros((kh_n, win * cin, wo * cout), np.float32)
  for kh in range(kh_n):
    for ow in range(wo):
      for kw in range(kw_n):
        w_in = stride * ow + kw - pad
        if 0 <= w_in < win:
          m[kh, w_in * cin:(w_in + 1) * cin, ow * cout:(ow + 1) * cout] = (
              w_hwio[kh, kw])
  return m.reshape(kh_n * win * cin, wo * cout)


def prepare_kernel_params(params, input_shape):
  """Fold eval-mode weights into the kernel's constant operands (runs once).

  All constants are independent of the batch size (no O(B^2) gathers)."""
  kp = {}
  hin, win = input_shape
  cout = 1
  convs = [("w1c", "s1", "sh1", 2), ("w2c", "s2", "sh2", 1),
           ("w3c", "s3", "sh3", 1)]
  for idx, (wk, sk, tk, pad) in enumerate(convs, start=1):
    w_hwio = np.asarray(params[wk], np.float32)
    kh_n, kw_n, cin, cout = w_hwio.shape
    ho = _conv_out(hin, kh_n, 2, pad)
    wo = _conv_out(win, kw_n, 2, pad)
    # bf16 MXU operands (exactness of the 0/1 structure is irrelevant here —
    # it is a weight fold, not a gather); accumulation stays f32 in-kernel.
    kp[f"m{idx}"] = jnp.asarray(_im2row_weight(w_hwio, win, wo, 2, pad),
                                jnp.bfloat16)
    scale = np.asarray(params[sk], np.float32)
    shift = np.asarray(params[tk], np.float32)
    kp[f"s{idx}"] = jnp.asarray(np.tile(scale, wo).reshape(1, wo * cout))
    kp[f"t{idx}"] = jnp.asarray(np.tile(shift, wo).reshape(1, wo * cout))
    hin, win = ho, wo

  h3, w3, c3 = hin, win, cout
  w1l = np.asarray(params["w1l"], np.float32)   # (c3*h3*w3, hidden), NCHW rows
  assert w1l.shape[0] == c3 * h3 * w3
  hidden = w1l.shape[1]
  # Fold the nn.Flatten (NCHW) permutation into the first Linear's rows; the
  # kernel's flatten slab is ordered (oh, ow, c).
  w1f = np.zeros((h3 * w3 * c3, hidden), np.float32)
  for oh in range(h3):
    for ow in range(w3):
      for c in range(c3):
        w1f[oh * (w3 * c3) + ow * c3 + c, :] = w1l[c * (h3 * w3) + oh * w3 + ow, :]
  kp["w1f"] = jnp.asarray(w1f, jnp.bfloat16)
  kp["b1"] = jnp.asarray(np.asarray(params["b1l"], np.float32).reshape(1, hidden))
  # Final Linear kept f32 (tiny; preserves output precision).
  kp["w2"] = jnp.asarray(np.asarray(params["w2l"], np.float32))
  kp["b2"] = jnp.asarray(np.asarray(params["b2l"], np.float32).reshape(1, -1))
  return kp


# ------------------------- deterministic parameters ---------------------------


def fold_bn(bias, gamma, beta, mean, var, eps=1e-5):
  scale = gamma / jnp.sqrt(var + eps)
  shift = beta + (bias - mean) * scale
  return scale, shift


def init_params(key, input_shape=(16, 16), embedding_dim=32):
  ks = jax.random.split(key, 20)
  flatten_dim = 64 * (input_shape[0] // 8) * (input_shape[1] // 8)

  def conv_w(k, kh, kw, cin, cout):
    return (jax.random.normal(k, (kh, kw, cin, cout), jnp.float32)
            / jnp.sqrt(kh * kw * cin).astype(jnp.float32))

  def bn(k, c):
    k1, k2, k3, k4 = jax.random.split(k, 4)
    gamma = 1.0 + 0.1 * jax.random.normal(k1, (c,), jnp.float32)
    beta = 0.1 * jax.random.normal(k2, (c,), jnp.float32)
    mean = 0.05 * jax.random.normal(k3, (c,), jnp.float32)
    var = 0.9 + 0.2 * jnp.abs(jax.random.normal(k4, (c,), jnp.float32))
    return gamma, beta, mean, var

  p = {}
  # Conv2d(1, 16, 5, stride=2, pad=2) + BN(16) + ReLU
  p["w1c"] = conv_w(ks[0], 5, 5, 1, 16)
  b1 = 0.05 * jax.random.normal(ks[1], (16,), jnp.float32)
  p["s1"], p["sh1"] = fold_bn(b1, *bn(ks[2], 16))
  # Conv2d(16, 32, 3, stride=2, pad=1) + BN(32) + ReLU
  p["w2c"] = conv_w(ks[3], 3, 3, 16, 32)
  b2 = 0.05 * jax.random.normal(ks[4], (32,), jnp.float32)
  p["s2"], p["sh2"] = fold_bn(b2, *bn(ks[5], 32))
  # Conv2d(32, 64, 3, stride=2, pad=1) + BN(64) + ReLU
  p["w3c"] = conv_w(ks[6], 3, 3, 32, 64)
  b3 = 0.05 * jax.random.normal(ks[7], (64,), jnp.float32)
  p["s3"], p["sh3"] = fold_bn(b3, *bn(ks[8], 64))
  # Linear(flatten_dim, 512) + ReLU + Dropout + Linear(512, embedding_dim)
  p["w1l"] = (jax.random.normal(ks[9], (flatten_dim, 512), jnp.float32)
              / jnp.sqrt(flatten_dim).astype(jnp.float32))
  p["b1l"] = 0.05 * jax.random.normal(ks[10], (512,), jnp.float32)
  p["w2l"] = (jax.random.normal(ks[11], (512, embedding_dim), jnp.float32)
              / jnp.sqrt(512.0))
  p["b2l"] = 0.05 * jax.random.normal(ks[12], (embedding_dim,), jnp.float32)
  return p


# -------------------------------- reference -----------------------------------


def reference_forward(x, params):
  h = x[..., None]

  def conv_ref(h, w, scale, shift, stride, pad):
    y = lax.conv_general_dilated(
        h, w, (stride, stride), [(pad, pad), (pad, pad)],
        dimension_numbers=("NHWC", "HWIO", "NHWC"),
        precision=lax.Precision.HIGHEST)
    return jnp.maximum(y * scale + shift, 0.0)

  h = conv_ref(h, params["w1c"], params["s1"], params["sh1"], 2, 2)
  h = conv_ref(h, params["w2c"], params["s2"], params["sh2"], 2, 1)
  h = conv_ref(h, params["w3c"], params["s3"], params["sh3"], 2, 1)
  flat = jnp.transpose(h, (0, 3, 1, 2)).reshape(h.shape[0], -1)
  hid = jnp.maximum(
      jnp.dot(flat, params["w1l"], precision=lax.Precision.HIGHEST)
      + params["b1l"], 0.0)
  return (jnp.dot(hid, params["w2l"], precision=lax.Precision.HIGHEST)
          + params["b2l"])


# ---------------------------------- main ---------------------------------------


if __name__ == "__main__":
  key = jax.random.PRNGKey(0)
  B, H, W = 2, 16, 16            # small input_shape=(16, 16)
  EMB = 32                       # small embedding_dim

  kx, kparam = jax.random.split(key)
  x = jax.random.normal(kx, (B, H, W), jnp.float32)
  params = init_params(kparam, input_shape=(H, W), embedding_dim=EMB)
  kernel_params = prepare_kernel_params(params, input_shape=(H, W))

  out = jax.block_until_ready(audio_embedding_forward(x, kernel_params))
  ref = jax.block_until_ready(reference_forward(x, params))

  assert out.shape == (B, EMB), out.shape
  # bf16 MXU operands (f32 accumulation) vs the HIGHEST-precision f32
  # reference: tolerance covers operand quantization only (the all-f32 variant
  # of this kernel matched at 2e-3); observed max error is ~1e-2.
  assert jnp.allclose(out, ref, rtol=2e-2, atol=2e-2), (
      float(jnp.max(jnp.abs(out - ref))))
  print("KERNEL_OK")
</pallas_src>

<mosaic_0001>
module attributes {stable_mosaic.version = 11 : i64} {
  func.func @_audio_embedding_kernel(%arg0: i32, %arg1: memref<32x16xf32, #tpu.memory_space<vmem>>, %arg2: memref<80x128xbf16, #tpu.memory_space<vmem>>, %arg3: memref<1x128xf32, #tpu.memory_space<vmem>>, %arg4: memref<1x128xf32, #tpu.memory_space<vmem>>, %arg5: memref<384x128xbf16, #tpu.memory_space<vmem>>, %arg6: memref<1x128xf32, #tpu.memory_space<vmem>>, %arg7: memref<1x128xf32, #tpu.memory_space<vmem>>, %arg8: memref<384x128xbf16, #tpu.memory_space<vmem>>, %arg9: memref<1x128xf32, #tpu.memory_space<vmem>>, %arg10: memref<1x128xf32, #tpu.memory_space<vmem>>, %arg11: memref<256x512xbf16, #tpu.memory_space<vmem>>, %arg12: memref<1x512xf32, #tpu.memory_space<vmem>>, %arg13: memref<512x32xf32, #tpu.memory_space<vmem>>, %arg14: memref<1x32xf32, #tpu.memory_space<vmem>>, %arg15: memref<2x32xf32, #tpu.memory_space<vmem>>, %arg16: memref<40x16xf32, #tpu.memory_space<vmem>>, %arg17: memref<16x80xf32, #tpu.memory_space<vmem>>, %arg18: memref<20x128xf32, #tpu.memory_space<vmem>>, %arg19: memref<8x384xf32, #tpu.memory_space<vmem>>, %arg20: memref<12x128xf32, #tpu.memory_space<vmem>>, %arg21: memref<4x384xf32, #tpu.memory_space<vmem>>, %arg22: memref<2x256xf32, #tpu.memory_space<vmem>>) attributes {dimension_semantics = [#tpu.dimension_semantics<arbitrary>], iteration_bounds = array<i64: 1>, scalar_prefetch = 0 : i64, scratch_operands = 7 : i64, tpu.core_type = #tpu.core_type<tc>, window_params = [{pipeline_mode = #tpu.pipeline_mode<synchronous>, transform_indices = @transform_0, window_bounds = array<i64: 32, 16>}, {pipeline_mode = #tpu.pipeline_mode<synchronous>, transform_indices = @transform_1, window_bounds = array<i64: 80, 128>}, {pipeline_mode = #tpu.pipeline_mode<synchronous>, transform_indices = @transform_2, window_bounds = array<i64: 1, 128>}, {pipeline_mode = #tpu.pipeline_mode<synchronous>, transform_indices = @transform_3, window_bounds = array<i64: 1, 128>}, {pipeline_mode = #tpu.pipeline_mode<synchronous>, transform_indices = @transform_4, window_bounds = array<i64: 384, 128>}, {pipeline_mode = #tpu.pipeline_mode<synchronous>, transform_indices = @transform_5, window_bounds = array<i64: 1, 128>}, {pipeline_mode = #tpu.pipeline_mode<synchronous>, transform_indices = @transform_6, window_bounds = array<i64: 1, 128>}, {pipeline_mode = #tpu.pipeline_mode<synchronous>, transform_indices = @transform_7, window_bounds = array<i64: 384, 128>}, {pipeline_mode = #tpu.pipeline_mode<synchronous>, transform_indices = @transform_8, window_bounds = array<i64: 1, 128>}, {pipeline_mode = #tpu.pipeline_mode<synchronous>, transform_indices = @transform_9, window_bounds = array<i64: 1, 128>}, {pipeline_mode = #tpu.pipeline_mode<synchronous>, transform_indices = @transform_10, window_bounds = array<i64: 256, 512>}, {pipeline_mode = #tpu.pipeline_mode<synchronous>, transform_indices = @transform_11, window_bounds = array<i64: 1, 512>}, {pipeline_mode = #tpu.pipeline_mode<synchronous>, transform_indices = @transform_12, window_bounds = array<i64: 512, 32>}, {pipeline_mode = #tpu.pipeline_mode<synchronous>, transform_indices = @transform_13, window_bounds = array<i64: 1, 32>}, {pipeline_mode = #tpu.pipeline_mode<synchronous>, transform_indices = @transform_14, window_bounds = array<i64: 2, 32>}]} {
    %c0 = arith.constant 0 : index
    %c0_0 = arith.constant 0 : index
    %0 = vector.load %arg1[%c0, %c0_0] : memref<32x16xf32, #tpu.memory_space<vmem>>, vector<32x16xf32>
    %cst = arith.constant 0.000000e+00 : f32
    %1 = vector.broadcast %cst : f32 to vector<40x16xf32>
    %c0_1 = arith.constant 0 : index
    %c0_2 = arith.constant 0 : index
    %2 = vector.load %arg16[%c0_1, %c0_2] : memref<40x16xf32, #tpu.memory_space<vmem>>, vector<40x16xf32>
    tpu.vector_store %arg16[%c0_1, %c0_2], %1 {strides = array<i32>} : memref<40x16xf32, #tpu.memory_space<vmem>>, vector<40x16xf32>,
    %3 = vector.extract_strided_slice %0 {offsets = [0, 0], sizes = [16, 16], strides = [1, 1]} : vector<32x16xf32> to vector<16x16xf32>
    %c2 = arith.constant 2 : index
    %c0_3 = arith.constant 0 : index
    %4 = vector.load %arg16[%c2, %c0_3] : memref<40x16xf32, #tpu.memory_space<vmem>>, vector<16x16xf32>
    tpu.vector_store %arg16[%c2, %c0_3], %3 {strides = array<i32>} : memref<40x16xf32, #tpu.memory_space<vmem>>, vector<16x16xf32>,
    %5 = vector.extract_strided_slice %0 {offsets = [16, 0], sizes = [16, 16], strides = [1, 1]} : vector<32x16xf32> to vector<16x16xf32>
    %c22 = arith.constant 22 : index
    %c0_4 = arith.constant 0 : index
    %6 = vector.load %arg16[%c22, %c0_4] : memref<40x16xf32, #tpu.memory_space<vmem>>, vector<16x16xf32>
    tpu.vector_store %arg16[%c22, %c0_4], %5 {strides = array<i32>} : memref<40x16xf32, #tpu.memory_space<vmem>>, vector<16x16xf32>,
    %c0_5 = arith.constant 0 : index
    %c0_6 = arith.constant 0 : index
    %7 = tpu.strided_load %arg16[%c0_5, %c0_6] {strides = array<i32: 2, 1>} : memref<40x16xf32, #tpu.memory_space<vmem>>, vector<8x16xf32>
    %c0_7 = arith.constant 0 : index
    %c0_8 = arith.constant 0 : index
    %8 = vector.load %arg17[%c0_7, %c0_8] : memref<16x80xf32, #tpu.memory_space<vmem>>, vector<8x16xf32>
    tpu.vector_store %arg17[%c0_7, %c0_8], %7 {strides = array<i32>} : memref<16x80xf32, #tpu.memory_space<vmem>>, vector<8x16xf32>,
    %c1 = arith.constant 1 : index
    %c0_9 = arith.constant 0 : index
    %9 = tpu.strided_load %arg16[%c1, %c0_9] {strides = array<i32: 2, 1>} : memref<40x16xf32, #tpu.memory_space<vmem>>, vector<8x16xf32>
    %c0_10 = arith.constant 0 : index
    %c16 = arith.constant 16 : index
    %10 = vector.load %arg17[%c0_10, %c16] : memref<16x80xf32, #tpu.memory_space<vmem>>, vector<8x16xf32>
    tpu.vector_store %arg17[%c0_10, %c16], %9 {strides = array<i32>} : memref<16x80xf32, #tpu.memory_space<vmem>>, vector<8x16xf32>,
    %c2_11 = arith.constant 2 : index
    %c0_12 = arith.constant 0 : index
    %11 = tpu.strided_load %arg16[%c2_11, %c0_12] {strides = array<i32: 2, 1>} : memref<40x16xf32, #tpu.memory_space<vmem>>, vector<8x16xf32>
    %c0_13 = arith.constant 0 : index
    %c32 = arith.constant 32 : index
    %12 = vector.load %arg17[%c0_13, %c32] : memref<16x80xf32, #tpu.memory_space<vmem>>, vector<8x16xf32>
    tpu.vector_store %arg17[%c0_13, %c32], %11 {strides = array<i32>} : memref<16x80xf32, #tpu.memory_space<vmem>>, vector<8x16xf32>,
    %c3 = arith.constant 3 : index
    %c0_14 = arith.constant 0 : index
    %13 = tpu.strided_load %arg16[%c3, %c0_14] {strides = array<i32: 2, 1>} : memref<40x16xf32, #tpu.memory_space<vmem>>, vector<8x16xf32>
    %c0_15 = arith.constant 0 : index
    %c48 = arith.constant 48 : index
    %14 = vector.load %arg17[%c0_15, %c48] : memref<16x80xf32, #tpu.memory_space<vmem>>, vector<8x16xf32>
    tpu.vector_store %arg17[%c0_15, %c48], %13 {strides = array<i32>} : memref<16x80xf32, #tpu.memory_space<vmem>>, vector<8x16xf32>,
    %c4 = arith.constant 4 : index
    %c0_16 = arith.constant 0 : index
    %15 = tpu.strided_load %arg16[%c4, %c0_16] {strides = array<i32: 2, 1>} : memref<40x16xf32, #tpu.memory_space<vmem>>, vector<8x16xf32>
    %c0_17 = arith.constant 0 : index
    %c64 = arith.constant 64 : index
    %16 = vector.load %arg17[%c0_17, %c64] : memref<16x80xf32, #tpu.memory_space<vmem>>, vector<8x16xf32>
    tpu.vector_store %arg17[%c0_17, %c64], %15 {strides = array<i32>} : memref<16x80xf32, #tpu.memory_space<vmem>>, vector<8x16xf32>,
    %c20 = arith.constant 20 : index
    %c0_18 = arith.constant 0 : index
    %17 = tpu.strided_load %arg16[%c20, %c0_18] {strides = array<i32: 2, 1>} : memref<40x16xf32, #tpu.memory_space<vmem>>, vector<8x16xf32>
    %c8 = arith.constant 8 : index
    %c0_19 = arith.constant 0 : index
    %18 = vector.load %arg17[%c8, %c0_19] : memref<16x80xf32, #tpu.memory_space<vmem>>, vector<8x16xf32>
    tpu.vector_store %arg17[%c8, %c0_19], %17 {strides = array<i32>} : memref<16x80xf32, #tpu.memory_space<vmem>>, vector<8x16xf32>,
    %c21 = arith.constant 21 : index
    %c0_20 = arith.constant 0 : index
    %19 = tpu.strided_load %arg16[%c21, %c0_20] {strides = array<i32: 2, 1>} : memref<40x16xf32, #tpu.memory_space<vmem>>, vector<8x16xf32>
    %c8_21 = arith.constant 8 : index
    %c16_22 = arith.constant 16 : index
    %20 = vector.load %arg17[%c8_21, %c16_22] : memref<16x80xf32, #tpu.memory_space<vmem>>, vector<8x16xf32>
    tpu.vector_store %arg17[%c8_21, %c16_22], %19 {strides = array<i32>} : memref<16x80xf32, #tpu.memory_space<vmem>>, vector<8x16xf32>,
    %c22_23 = arith.constant 22 : index
    %c0_24 = arith.constant 0 : index
    %21 = tpu.strided_load %arg16[%c22_23, %c0_24] {strides = array<i32: 2, 1>} : memref<40x16xf32, #tpu.memory_space<vmem>>, vector<8x16xf32>
    %c8_25 = arith.constant 8 : index
    %c32_26 = arith.constant 32 : index
    %22 = vector.load %arg17[%c8_25, %c32_26] : memref<16x80xf32, #tpu.memory_space<vmem>>, vector<8x16xf32>
    tpu.vector_store %arg17[%c8_25, %c32_26], %21 {strides = array<i32>} : memref<16x80xf32, #tpu.memory_space<vmem>>, vector<8x16xf32>,
    %c23 = arith.constant 23 : index
    %c0_27 = arith.constant 0 : index
    %23 = tpu.strided_load %arg16[%c23, %c0_27] {strides = array<i32: 2, 1>} : memref<40x16xf32, #tpu.memory_space<vmem>>, vector<8x16xf32>
    %c8_28 = arith.constant 8 : index
    %c48_29 = arith.constant 48 : index
    %24 = vector.load %arg17[%c8_28, %c48_29] : memref<16x80xf32, #tpu.memory_space<vmem>>, vector<8x16xf32>
    tpu.vector_store %arg17[%c8_28, %c48_29], %23 {strides = array<i32>} : memref<16x80xf32, #tpu.memory_space<vmem>>, vector<8x16xf32>,
    %c24 = arith.constant 24 : index
    %c0_30 = arith.constant 0 : index
    %25 = tpu.strided_load %arg16[%c24, %c0_30] {strides = array<i32: 2, 1>} : memref<40x16xf32, #tpu.memory_space<vmem>>, vector<8x16xf32>
    %c8_31 = arith.constant 8 : index
    %c64_32 = arith.constant 64 : index
    %26 = vector.load %arg17[%c8_31, %c64_32] : memref<16x80xf32, #tpu.memory_space<vmem>>, vector<8x16xf32>
    tpu.vector_store %arg17[%c8_31, %c64_32], %25 {strides = array<i32>} : memref<16x80xf32, #tpu.memory_space<vmem>>, vector<8x16xf32>,
    %c0_33 = arith.constant 0 : index
    %c0_34 = arith.constant 0 : index
    %27 = vector.load %arg17[%c0_33, %c0_34] : memref<16x80xf32, #tpu.memory_space<vmem>>, vector<16x80xf32>
    %28 = arith.truncf %27 : vector<16x80xf32> to vector<16x80xbf16>
    %c0_35 = arith.constant 0 : index
    %c0_36 = arith.constant 0 : index
    %29 = vector.load %arg2[%c0_35, %c0_36] : memref<80x128xbf16, #tpu.memory_space<vmem>>, vector<80x128xbf16>
    %cst_37 = arith.constant dense<0.000000e+00> : vector<16x128xf32>
    %30 = tpu.matmul %28, %29, %cst_37 {dimension_numbers = #tpu.dot_dimension_numbers<[1], [0], [0], [1], [0, 0, 1, 1], [], []>} : vector<16x80xbf16>, vector<80x128xbf16>, vector<16x128xf32> -> vector<16x128xf32>
    %c0_38 = arith.constant 0 : index
    %c0_39 = arith.constant 0 : index
    %31 = vector.load %arg3[%c0_38, %c0_39] : memref<1x128xf32, #tpu.memory_space<vmem>>, vector<1x128xf32>
    %32 = vector.broadcast %31 : vector<1x128xf32> to vector<16x128xf32>
    %33 = arith.mulf %30, %32 : vector<16x128xf32>
    %c0_40 = arith.constant 0 : index
    %c0_41 = arith.constant 0 : index
    %34 = vector.load %arg4[%c0_40, %c0_41] : memref<1x128xf32, #tpu.memory_space<vmem>>, vector<1x128xf32>
    %35 = vector.broadcast %34 : vector<1x128xf32> to vector<16x128xf32>
    %36 = arith.addf %33, %35 : vector<16x128xf32>
    %cst_42 = arith.constant 0.000000e+00 : f32
    %37 = vector.broadcast %cst_42 : f32 to vector<16x128xf32>
    %38 = arith.maximumf %36, %37 : vector<16x128xf32>
    %cst_43 = arith.constant 0.000000e+00 : f32
    %39 = vector.broadcast %cst_43 : f32 to vector<20x128xf32>
    %c0_44 = arith.constant 0 : index
    %c0_45 = arith.constant 0 : index
    %40 = vector.load %arg18[%c0_44, %c0_45] : memref<20x128xf32, #tpu.memory_space<vmem>>, vector<20x128xf32>
    tpu.vector_store %arg18[%c0_44, %c0_45], %39 {strides = array<i32>} : memref<20x128xf32, #tpu.memory_space<vmem>>, vector<20x128xf32>,
    %41 = vector.extract_strided_slice %38 {offsets = [0, 0], sizes = [8, 128], strides = [1, 1]} : vector<16x128xf32> to vector<8x128xf32>
    %c1_46 = arith.constant 1 : index
    %c0_47 = arith.constant 0 : index
    %42 = vector.load %arg18[%c1_46, %c0_47] : memref<20x128xf32, #tpu.memory_space<vmem>>, vector<8x128xf32>
    tpu.vector_store %arg18[%c1_46, %c0_47], %41 {strides = array<i32>} : memref<20x128xf32, #tpu.memory_space<vmem>>, vector<8x128xf32>,
    %43 = vector.extract_strided_slice %38 {offsets = [8, 0], sizes = [8, 128], strides = [1, 1]} : vector<16x128xf32> to vector<8x128xf32>
    %c11 = arith.constant 11 : index
    %c0_48 = arith.constant 0 : index
    %44 = vector.load %arg18[%c11, %c0_48] : memref<20x128xf32, #tpu.memory_space<vmem>>, vector<8x128xf32>
    tpu.vector_store %arg18[%c11, %c0_48], %43 {strides = array<i32>} : memref<20x128xf32, #tpu.memory_space<vmem>>, vector<8x128xf32>,
    %c0_49 = arith.constant 0 : index
    %c0_50 = arith.constant 0 : index
    %45 = tpu.strided_load %arg18[%c0_49, %c0_50] {strides = array<i32: 2, 1>} : memref<20x128xf32, #tpu.memory_space<vmem>>, vector<4x128xf32>
    %c0_51 = arith.constant 0 : index
    %c0_52 = arith.constant 0 : index
    %46 = vector.load %arg19[%c0_51, %c0_52] : memref<8x384xf32, #tpu.memory_space<vmem>>, vector<4x128xf32>
    tpu.vector_store %arg19[%c0_51, %c0_52], %45 {strides = array<i32>} : memref<8x384xf32, #tpu.memory_space<vmem>>, vector<4x128xf32>,
    %c1_53 = arith.constant 1 : index
    %c0_54 = arith.constant 0 : index
    %47 = tpu.strided_load %arg18[%c1_53, %c0_54] {strides = array<i32: 2, 1>} : memref<20x128xf32, #tpu.memory_space<vmem>>, vector<4x128xf32>
    %c0_55 = arith.constant 0 : index
    %c128 = arith.constant 128 : index
    %48 = vector.load %arg19[%c0_55, %c128] : memref<8x384xf32, #tpu.memory_space<vmem>>, vector<4x128xf32>
    tpu.vector_store %arg19[%c0_55, %c128], %47 {strides = array<i32>} : memref<8x384xf32, #tpu.memory_space<vmem>>, vector<4x128xf32>,
    %c2_56 = arith.constant 2 : index
    %c0_57 = arith.constant 0 : index
    %49 = tpu.strided_load %arg18[%c2_56, %c0_57] {strides = array<i32: 2, 1>} : memref<20x128xf32, #tpu.memory_space<vmem>>, vector<4x128xf32>
    %c0_58 = arith.constant 0 : index
    %c256 = arith.constant 256 : index
    %50 = vector.load %arg19[%c0_58, %c256] : memref<8x384xf32, #tpu.memory_space<vmem>>, vector<4x128xf32>
    tpu.vector_store %arg19[%c0_58, %c256], %49 {strides = array<i32>} : memref<8x384xf32, #tpu.memory_space<vmem>>, vector<4x128xf32>,
    %c10 = arith.constant 10 : index
    %c0_59 = arith.constant 0 : index
    %51 = tpu.strided_load %arg18[%c10, %c0_59] {strides = array<i32: 2, 1>} : memref<20x128xf32, #tpu.memory_space<vmem>>, vector<4x128xf32>
    %c4_60 = arith.constant 4 : index
    %c0_61 = arith.constant 0 : index
    %52 = vector.load %arg19[%c4_60, %c0_61] : memref<8x384xf32, #tpu.memory_space<vmem>>, vector<4x128xf32>
    tpu.vector_store %arg19[%c4_60, %c0_61], %51 {strides = array<i32>} : memref<8x384xf32, #tpu.memory_space<vmem>>, vector<4x128xf32>,
    %c11_62 = arith.constant 11 : index
    %c0_63 = arith.constant 0 : index
    %53 = tpu.strided_load %arg18[%c11_62, %c0_63] {strides = array<i32: 2, 1>} : memref<20x128xf32, #tpu.memory_space<vmem>>, vector<4x128xf32>
    %c4_64 = arith.constant 4 : index
    %c128_65 = arith.constant 128 : index
    %54 = vector.load %arg19[%c4_64, %c128_65] : memref<8x384xf32, #tpu.memory_space<vmem>>, vector<4x128xf32>
    tpu.vector_store %arg19[%c4_64, %c128_65], %53 {strides = array<i32>} : memref<8x384xf32, #tpu.memory_space<vmem>>, vector<4x128xf32>,
    %c12 = arith.constant 12 : index
    %c0_66 = arith.constant 0 : index
    %55 = tpu.strided_load %arg18[%c12, %c0_66] {strides = array<i32: 2, 1>} : memref<20x128xf32, #tpu.memory_space<vmem>>, vector<4x128xf32>
    %c4_67 = arith.constant 4 : index
    %c256_68 = arith.constant 256 : index
    %56 = vector.load %arg19[%c4_67, %c256_68] : memref<8x384xf32, #tpu.memory_space<vmem>>, vector<4x128xf32>
    tpu.vector_store %arg19[%c4_67, %c256_68], %55 {strides = array<i32>} : memref<8x384xf32, #tpu.memory_space<vmem>>, vector<4x128xf32>,
    %c0_69 = arith.constant 0 : index
    %c0_70 = arith.constant 0 : index
    %57 = vector.load %arg19[%c0_69, %c0_70] : memref<8x384xf32, #tpu.memory_space<vmem>>, vector<8x384xf32>
    %58 = arith.truncf %57 : vector<8x384xf32> to vector<8x384xbf16>
    %c0_71 = arith.constant 0 : index
    %c0_72 = arith.constant 0 : index
    %59 = vector.load %arg5[%c0_71, %c0_72] : memref<384x128xbf16, #tpu.memory_space<vmem>>, vector<384x128xbf16>
    %cst_73 = arith.constant dense<0.000000e+00> : vector<8x128xf32>
    %60 = tpu.matmul %58, %59, %cst_73 {dimension_numbers = #tpu.dot_dimension_numbers<[1], [0], [0], [1], [0, 0, 1, 1], [], []>} : vector<8x384xbf16>, vector<384x128xbf16>, vector<8x128xf32> -> vector<8x128xf32>
    %c0_74 = arith.constant 0 : index
    %c0_75 = arith.constant 0 : index
    %61 = vector.load %arg6[%c0_74, %c0_75] : memref<1x128xf32, #tpu.memory_space<vmem>>, vector<1x128xf32>
    %62 = vector.broadcast %61 : vector<1x128xf32> to vector<8x128xf32>
    %63 = arith.mulf %60, %62 : vector<8x128xf32>
    %c0_76 = arith.constant 0 : index
    %c0_77 = arith.constant 0 : index
    %64 = vector.load %arg7[%c0_76, %c0_77] : memref<1x128xf32, #tpu.memory_space<vmem>>, vector<1x128xf32>
    %65 = vector.broadcast %64 : vector<1x128xf32> to vector<8x128xf32>
    %66 = arith.addf %63, %65 : vector<8x128xf32>
    %cst_78 = arith.constant 0.000000e+00 : f32
    %67 = vector.broadcast %cst_78 : f32 to vector<8x128xf32>
    %68 = arith.maximumf %66, %67 : vector<8x128xf32>
    %cst_79 = arith.constant 0.000000e+00 : f32
    %69 = vector.broadcast %cst_79 : f32 to vector<12x128xf32>
    %c0_80 = arith.constant 0 : index
    %c0_81 = arith.constant 0 : index
    %70 = vector.load %arg20[%c0_80, %c0_81] : memref<12x128xf32, #tpu.memory_space<vmem>>, vector<12x128xf32>
    tpu.vector_store %arg20[%c0_80, %c0_81], %69 {strides = array<i32>} : memref<12x128xf32, #tpu.memory_space<vmem>>, vector<12x128xf32>,
    %71 = vector.extract_strided_slice %68 {offsets = [0, 0], sizes = [4, 128], strides = [1, 1]} : vector<8x128xf32> to vector<4x128xf32>
    %c1_82 = arith.constant 1 : index
    %c0_83 = arith.constant 0 : index
    %72 = vector.load %arg20[%c1_82, %c0_83] : memref<12x128xf32, #tpu.memory_space<vmem>>, vector<4x128xf32>
    tpu.vector_store %arg20[%c1_82, %c0_83], %71 {strides = array<i32>} : memref<12x128xf32, #tpu.memory_space<vmem>>, vector<4x128xf32>,
    %73 = vector.extract_strided_slice %68 {offsets = [4, 0], sizes = [4, 128], strides = [1, 1]} : vector<8x128xf32> to vector<4x128xf32>
    %c7 = arith.constant 7 : index
    %c0_84 = arith.constant 0 : index
    %74 = vector.load %arg20[%c7, %c0_84] : memref<12x128xf32, #tpu.memory_space<vmem>>, vector<4x128xf32>
    tpu.vector_store %arg20[%c7, %c0_84], %73 {strides = array<i32>} : memref<12x128xf32, #tpu.memory_space<vmem>>, vector<4x128xf32>,
    %c0_85 = arith.constant 0 : index
    %c0_86 = arith.constant 0 : index
    %75 = tpu.strided_load %arg20[%c0_85, %c0_86] {strides = array<i32: 2, 1>} : memref<12x128xf32, #tpu.memory_space<vmem>>, vector<2x128xf32>
    %c0_87 = arith.constant 0 : index
    %c0_88 = arith.constant 0 : index
    %76 = vector.load %arg21[%c0_87, %c0_88] : memref<4x384xf32, #tpu.memory_space<vmem>>, vector<2x128xf32>
    tpu.vector_store %arg21[%c0_87, %c0_88], %75 {strides = array<i32>} : memref<4x384xf32, #tpu.memory_space<vmem>>, vector<2x128xf32>,
    %c1_89 = arith.constant 1 : index
    %c0_90 = arith.constant 0 : index
    %77 = tpu.strided_load %arg20[%c1_89, %c0_90] {strides = array<i32: 2, 1>} : memref<12x128xf32, #tpu.memory_space<vmem>>, vector<2x128xf32>
    %c0_91 = arith.constant 0 : index
    %c128_92 = arith.constant 128 : index
    %78 = vector.load %arg21[%c0_91, %c128_92] : memref<4x384xf32, #tpu.memory_space<vmem>>, vector<2x128xf32>
    tpu.vector_store %arg21[%c0_91, %c128_92], %77 {strides = array<i32>} : memref<4x384xf32, #tpu.memory_space<vmem>>, vector<2x128xf32>,
    %c2_93 = arith.constant 2 : index
    %c0_94 = arith.constant 0 : index
    %79 = tpu.strided_load %arg20[%c2_93, %c0_94] {strides = array<i32: 2, 1>} : memref<12x128xf32, #tpu.memory_space<vmem>>, vector<2x128xf32>
    %c0_95 = arith.constant 0 : index
    %c256_96 = arith.constant 256 : index
    %80 = vector.load %arg21[%c0_95, %c256_96] : memref<4x384xf32, #tpu.memory_space<vmem>>, vector<2x128xf32>
    tpu.vector_store %arg21[%c0_95, %c256_96], %79 {strides = array<i32>} : memref<4x384xf32, #tpu.memory_space<vmem>>, vector<2x128xf32>,
    %c6 = arith.constant 6 : index
    %c0_97 = arith.constant 0 : index
    %81 = tpu.strided_load %arg20[%c6, %c0_97] {strides = array<i32: 2, 1>} : memref<12x128xf32, #tpu.memory_space<vmem>>, vector<2x128xf32>
    %c2_98 = arith.constant 2 : index
    %c0_99 = arith.constant 0 : index
    %82 = vector.load %arg21[%c2_98, %c0_99] : memref<4x384xf32, #tpu.memory_space<vmem>>, vector<2x128xf32>
    tpu.vector_store %arg21[%c2_98, %c0_99], %81 {strides = array<i32>} : memref<4x384xf32, #tpu.memory_space<vmem>>, vector<2x128xf32>,
    %c7_100 = arith.constant 7 : index
    %c0_101 = arith.constant 0 : index
    %83 = tpu.strided_load %arg20[%c7_100, %c0_101] {strides = array<i32: 2, 1>} : memref<12x128xf32, #tpu.memory_space<vmem>>, vector<2x128xf32>
    %c2_102 = arith.constant 2 : index
    %c128_103 = arith.constant 128 : index
    %84 = vector.load %arg21[%c2_102, %c128_103] : memref<4x384xf32, #tpu.memory_space<vmem>>, vector<2x128xf32>
    tpu.vector_store %arg21[%c2_102, %c128_103], %83 {strides = array<i32>} : memref<4x384xf32, #tpu.memory_space<vmem>>, vector<2x128xf32>,
    %c8_104 = arith.constant 8 : index
    %c0_105 = arith.constant 0 : index
    %85 = tpu.strided_load %arg20[%c8_104, %c0_105] {strides = array<i32: 2, 1>} : memref<12x128xf32, #tpu.memory_space<vmem>>, vector<2x128xf32>
    %c2_106 = arith.constant 2 : index
    %c256_107 = arith.constant 256 : index
    %86 = vector.load %arg21[%c2_106, %c256_107] : memref<4x384xf32, #tpu.memory_space<vmem>>, vector<2x128xf32>
    tpu.vector_store %arg21[%c2_106, %c256_107], %85 {strides = array<i32>} : memref<4x384xf32, #tpu.memory_space<vmem>>, vector<2x128xf32>,
    %c0_108 = arith.constant 0 : index
    %c0_109 = arith.constant 0 : index
    %87 = vector.load %arg21[%c0_108, %c0_109] : memref<4x384xf32, #tpu.memory_space<vmem>>, vector<4x384xf32>
    %88 = arith.truncf %87 : vector<4x384xf32> to vector<4x384xbf16>
    %c0_110 = arith.constant 0 : index
    %c0_111 = arith.constant 0 : index
    %89 = vector.load %arg8[%c0_110, %c0_111] : memref<384x128xbf16, #tpu.memory_space<vmem>>, vector<384x128xbf16>
    %cst_112 = arith.constant dense<0.000000e+00> : vector<4x128xf32>
    %90 = tpu.matmul %88, %89, %cst_112 {dimension_numbers = #tpu.dot_dimension_numbers<[1], [0], [0], [1], [0, 0, 1, 1], [], []>} : vector<4x384xbf16>, vector<384x128xbf16>, vector<4x128xf32> -> vector<4x128xf32>
    %c0_113 = arith.constant 0 : index
    %c0_114 = arith.constant 0 : index
    %91 = vector.load %arg9[%c0_113, %c0_114] : memref<1x128xf32, #tpu.memory_space<vmem>>, vector<1x128xf32>
    %92 = vector.broadcast %91 : vector<1x128xf32> to vector<4x128xf32>
    %93 = arith.mulf %90, %92 : vector<4x128xf32>
    %c0_115 = arith.constant 0 : index
    %c0_116 = arith.constant 0 : index
    %94 = vector.load %arg10[%c0_115, %c0_116] : memref<1x128xf32, #tpu.memory_space<vmem>>, vector<1x128xf32>
    %95 = vector.broadcast %94 : vector<1x128xf32> to vector<4x128xf32>
    %96 = arith.addf %93, %95 : vector<4x128xf32>
    %cst_117 = arith.constant 0.000000e+00 : f32
    %97 = vector.broadcast %cst_117 : f32 to vector<4x128xf32>
    %98 = arith.maximumf %96, %97 : vector<4x128xf32>
    %99 = vector.extract_strided_slice %98 {offsets = [0, 0], sizes = [1, 128], strides = [1, 1]} : vector<4x128xf32> to vector<1x128xf32>
    %c0_118 = arith.constant 0 : index
    %c0_119 = arith.constant 0 : index
    %100 = vector.load %arg22[%c0_118, %c0_119] : memref<2x256xf32, #tpu.memory_space<vmem>>, vector<1x128xf32>
    tpu.vector_store %arg22[%c0_118, %c0_119], %99 {strides = array<i32>} : memref<2x256xf32, #tpu.memory_space<vmem>>, vector<1x128xf32>,
    %101 = vector.extract_strided_slice %98 {offsets = [1, 0], sizes = [1, 128], strides = [1, 1]} : vector<4x128xf32> to vector<1x128xf32>
    %c0_120 = arith.constant 0 : index
    %c128_121 = arith.constant 128 : index
    %102 = vector.load %arg22[%c0_120, %c128_121] : memref<2x256xf32, #tpu.memory_space<vmem>>, vector<1x128xf32>
    tpu.vector_store %arg22[%c0_120, %c128_121], %101 {strides = array<i32>} : memref<2x256xf32, #tpu.memory_space<vmem>>, vector<1x128xf32>,
    %103 = vector.extract_strided_slice %98 {offsets = [2, 0], sizes = [1, 128], strides = [1, 1]} : vector<4x128xf32> to vector<1x128xf32>
    %c1_122 = arith.constant 1 : index
    %c0_123 = arith.constant 0 : index
    %104 = vector.load %arg22[%c1_122, %c0_123] : memref<2x256xf32, #tpu.memory_space<vmem>>, vector<1x128xf32>
    tpu.vector_store %arg22[%c1_122, %c0_123], %103 {strides = array<i32>} : memref<2x256xf32, #tpu.memory_space<vmem>>, vector<1x128xf32>,
    %105 = vector.extract_strided_slice %98 {offsets = [3, 0], sizes = [1, 128], strides = [1, 1]} : vector<4x128xf32> to vector<1x128xf32>
    %c1_124 = arith.constant 1 : index
    %c128_125 = arith.constant 128 : index
    %106 = vector.load %arg22[%c1_124, %c128_125] : memref<2x256xf32, #tpu.memory_space<vmem>>, vector<1x128xf32>
    tpu.vector_store %arg22[%c1_124, %c128_125], %105 {strides = array<i32>} : memref<2x256xf32, #tpu.memory_space<vmem>>, vector<1x128xf32>,
    %c0_126 = arith.constant 0 : index
    %c0_127 = arith.constant 0 : index
    %107 = vector.load %arg22[%c0_126, %c0_127] : memref<2x256xf32, #tpu.memory_space<vmem>>, vector<2x256xf32>
    %108 = arith.truncf %107 : vector<2x256xf32> to vector<2x256xbf16>
    %c0_128 = arith.constant 0 : index
    %c0_129 = arith.constant 0 : index
    %109 = vector.load %arg11[%c0_128, %c0_129] : memref<256x512xbf16, #tpu.memory_space<vmem>>, vector<256x512xbf16>
    %cst_130 = arith.constant dense<0.000000e+00> : vector<2x512xf32>
    %110 = tpu.matmul %108, %109, %cst_130 {dimension_numbers = #tpu.dot_dimension_numbers<[1], [0], [0], [1], [0, 0, 1, 1], [], []>} : vector<2x256xbf16>, vector<256x512xbf16>, vector<2x512xf32> -> vector<2x512xf32>
    %c0_131 = arith.constant 0 : index
    %c0_132 = arith.constant 0 : index
    %111 = vector.load %arg12[%c0_131, %c0_132] : memref<1x512xf32, #tpu.memory_space<vmem>>, vector<1x512xf32>
    %112 = vector.broadcast %111 : vector<1x512xf32> to vector<2x512xf32>
    %113 = arith.addf %110, %112 : vector<2x512xf32>
    %cst_133 = arith.constant 0.000000e+00 : f32
    %114 = vector.broadcast %cst_133 : f32 to vector<2x512xf32>
    %115 = arith.maximumf %113, %114 : vector<2x512xf32>
    %c0_134 = arith.constant 0 : index
    %c0_135 = arith.constant 0 : index
    %116 = vector.load %arg13[%c0_134, %c0_135] : memref<512x32xf32, #tpu.memory_space<vmem>>, vector<512x32xf32>
    %cst_136 = arith.constant dense<0.000000e+00> : vector<2x32xf32>
    %117 = tpu.matmul %115, %116, %cst_136 {dimension_numbers = #tpu.dot_dimension_numbers<[1], [0], [0], [1], [0, 0, 1, 1], [], []>} : vector<2x512xf32>, vector<512x32xf32>, vector<2x32xf32> -> vector<2x32xf32>
    %c0_137 = arith.constant 0 : index
    %c0_138 = arith.constant 0 : index
    %118 = vector.load %arg14[%c0_137, %c0_138] : memref<1x32xf32, #tpu.memory_space<vmem>>, vector<1x32xf32>
    %119 = vector.broadcast %118 : vector<1x32xf32> to vector<2x32xf32>
    %120 = arith.addf %117, %119 : vector<2x32xf32>
    %c0_139 = arith.constant 0 : index
    %c0_140 = arith.constant 0 : index
    %121 = vector.load %arg15[%c0_139, %c0_140] : memref<2x32xf32, #tpu.memory_space<vmem>>, vector<2x32xf32>
    tpu.vector_store %arg15[%c0_139, %c0_140], %120 {strides = array<i32>} : memref<2x32xf32, #tpu.memory_space<vmem>>, vector<2x32xf32>,
    return
  }
  func.func @transform_0(%arg0: i32) -> (i32, i32) {
    %c0_i32 = arith.constant 0 : i32
    %c0_i32_0 = arith.constant 0 : i32
    %c0_i32_1 = arith.constant 0 : i32
    return %c0_i32, %c0_i32_0 : i32, i32
  }
  func.func @transform_1(%arg0: i32) -> (i32, i32) {
    %c0_i32 = arith.constant 0 : i32
    %c0_i32_0 = arith.constant 0 : i32
    %c0_i32_1 = arith.constant 0 : i32
    return %c0_i32, %c0_i32_0 : i32, i32
  }
  func.func @transform_2(%arg0: i32) -> (i32, i32) {
    %c0_i32 = arith.constant 0 : i32
    %c0_i32_0 = arith.constant 0 : i32
    %c0_i32_1 = arith.constant 0 : i32
    return %c0_i32, %c0_i32_0 : i32, i32
  }
  func.func @transform_3(%arg0: i32) -> (i32, i32) {
    %c0_i32 = arith.constant 0 : i32
    %c0_i32_0 = arith.constant 0 : i32
    %c0_i32_1 = arith.constant 0 : i32
    return %c0_i32, %c0_i32_0 : i32, i32
  }
  func.func @transform_4(%arg0: i32) -> (i32, i32) {
    %c0_i32 = arith.constant 0 : i32
    %c0_i32_0 = arith.constant 0 : i32
    %c0_i32_1 = arith.constant 0 : i32
    return %c0_i32, %c0_i32_0 : i32, i32
  }
  func.func @transform_5(%arg0: i32) -> (i32, i32) {
    %c0_i32 = arith.constant 0 : i32
    %c0_i32_0 = arith.constant 0 : i32
    %c0_i32_1 = arith.constant 0 : i32
    return %c0_i32, %c0_i32_0 : i32, i32
  }
  func.func @transform_6(%arg0: i32) -> (i32, i32) {
    %c0_i32 = arith.constant 0 : i32
    %c0_i32_0 = arith.constant 0 : i32
    %c0_i32_1 = arith.constant 0 : i32
    return %c0_i32, %c0_i32_0 : i32, i32
  }
  func.func @transform_7(%arg0: i32) -> (i32, i32) {
    %c0_i32 = arith.constant 0 : i32
    %c0_i32_0 = arith.constant 0 : i32
    %c0_i32_1 = arith.constant 0 : i32
    return %c0_i32, %c0_i32_0 : i32, i32
  }
  func.func @transform_8(%arg0: i32) -> (i32, i32) {
    %c0_i32 = arith.constant 0 : i32
    %c0_i32_0 = arith.constant 0 : i32
    %c0_i32_1 = arith.constant 0 : i32
    return %c0_i32, %c0_i32_0 : i32, i32
  }
  func.func @transform_9(%arg0: i32) -> (i32, i32) {
    %c0_i32 = arith.constant 0 : i32
    %c0_i32_0 = arith.constant 0 : i32
    %c0_i32_1 = arith.constant 0 : i32
    return %c0_i32, %c0_i32_0 : i32, i32
  }
  func.func @transform_10(%arg0: i32) -> (i32, i32) {
    %c0_i32 = arith.constant 0 : i32
    %c0_i32_0 = arith.constant 0 : i32
    %c0_i32_1 = arith.constant 0 : i32
    return %c0_i32, %c0_i32_0 : i32, i32
  }
  func.func @transform_11(%arg0: i32) -> (i32, i32) {
    %c0_i32 = arith.constant 0 : i32
    %c0_i32_0 = arith.constant 0 : i32
    %c0_i32_1 = arith.constant 0 : i32
    return %c0_i32, %c0_i32_0 : i32, i32
  }
  func.func @transform_12(%arg0: i32) -> (i32, i32) {
    %c0_i32 = arith.constant 0 : i32
    %c0_i32_0 = arith.constant 0 : i32
    %c0_i32_1 = arith.constant 0 : i32
    return %c0_i32, %c0_i32_0 : i32, i32
  }
  func.func @transform_13(%arg0: i32) -> (i32, i32) {
    %c0_i32 = arith.constant 0 : i32
    %c0_i32_0 = arith.constant 0 : i32
    %c0_i32_1 = arith.constant 0 : i32
    return %c0_i32, %c0_i32_0 : i32, i32
  }
  func.func @transform_14(%arg0: i32) -> (i32, i32) {
    %c0_i32 = arith.constant 0 : i32
    %c0_i32_0 = arith.constant 0 : i32
    %c0_i32_1 = arith.constant 0 : i32
    return %c0_i32, %c0_i32_0 : i32, i32
  }
}

</mosaic_0001>

<llo_original>
// kernel: audio_embedding_forward.1
$region0: #{audio_embedding_forward.1}
  #allocation0 [shape = 'u32[]', space=smem, size = 0x4, offset = 0x4, fixed_abs, tag = 'smem constant byte address 0x4 - core index']
  #allocation1 [shape = 'u32[72,128]{1,0:T(1,128)}', space=vmem, size = 0x9000, scoped, tag = 'internal scratch']
  #allocation2 [shape = 'f32[40,16]{1,0:T(8,128)}', space=vmem, size = 0x5000, scoped, tag = 'scratch operand']
  #allocation3 [shape = 'f32[16,80]{1,0:T(8,128)}', space=vmem, size = 0x2000, scoped, tag = 'scratch operand']
  #allocation4 [shape = 'f32[20,128]{1,0:T(8,128)}', space=vmem, size = 0x3000, scoped, tag = 'scratch operand']
  #allocation5 [shape = 'f32[8,384]{1,0:T(8,128)}', space=vmem, size = 0x3000, scoped, tag = 'scratch operand']
  #allocation6 [shape = 'f32[12,128]{1,0:T(8,128)}', space=vmem, size = 0x2000, scoped, tag = 'scratch operand']
  #allocation7 [shape = 'f32[4,384]{1,0:T(4,128)}', space=vmem, size = 0x1800, scoped, tag = 'scratch operand']
  #allocation8 [shape = 'f32[2,256]{1,0:T(2,128)}', space=vmem, size = 0x800, scoped, tag = 'scratch operand']
  %s0 = inlined_call_operand.vmem [shape: f32[32,16], index: 0, kind: input, shape index: {}]
  %s1 = inlined_call_operand.vmem [shape: bf16[80,128], index: 1, kind: input, shape index: {}]
  %s2 = inlined_call_operand.vmem [shape: f32[1,128], index: 2, kind: input, shape index: {}]
  %s3 = inlined_call_operand.vmem [shape: f32[1,128], index: 3, kind: input, shape index: {}]
  %s4 = inlined_call_operand.hbm [shape: bf16[384,128], index: 4, kind: input, shape index: {}]
  %s5 = inlined_call_operand.vmem [shape: f32[1,128], index: 5, kind: input, shape index: {}]
  %s6 = inlined_call_operand.vmem [shape: f32[1,128], index: 6, kind: input, shape index: {}]
  %s7 = inlined_call_operand.hbm [shape: bf16[384,128], index: 7, kind: input, shape index: {}]
  %s8 = inlined_call_operand.vmem [shape: f32[1,128], index: 8, kind: input, shape index: {}]
  %s9 = inlined_call_operand.vmem [shape: f32[1,128], index: 9, kind: input, shape index: {}]
  %s10 = inlined_call_operand.vmem [shape: bf16[256,512], index: 10, kind: input, shape index: {}]
  %s11 = inlined_call_operand.vmem [shape: f32[1,512], index: 11, kind: input, shape index: {}]
  %s12 = inlined_call_operand.vmem [shape: f32[512,32], index: 12, kind: input, shape index: {}]
  %s13 = inlined_call_operand.vmem [shape: f32[1,32], index: 13, kind: input, shape index: {}]
  %s14 = inlined_call_operand.hbm [shape: f32[2,32], index: 14, kind: output, shape index: {}]
  %s15 = sld [smem:[#allocation0]]
  $region74: #{audio_embedding_forward.1} parent=0
    _
  %s17 = ssub.s32 1, %s15
  %s18 = scalar_select 0, %s17, %s15
  $region1: #{audio_embedding_forward.1} parent=0
    #allocation9 [shape = 'u8[98304]{0}', space=vmem, size = 0x18000, scoped, tag = 'input window, operand 4, single buffered']
    #allocation10 [shape = 's32[1]{0}', space=sflag, size = 0x4, scoped, tag = 'scoped memory for audio_embedding_forward.1']
    #allocation11 [shape = 's32[1]{0}', space=sflag, size = 0x4, scoped, tag = 'scoped memory for audio_embedding_forward.1']
    #allocation12 [shape = 'u8[98304]{0}', space=vmem, size = 0x18000, scoped, tag = 'input window, operand 7, single buffered']
    #allocation13 [shape = 's32[1]{0}', space=sflag, size = 0x4, scoped, tag = 'scoped memory for audio_embedding_forward.1']
    #allocation14 [shape = 'u8[1024]{0}', space=vmem, size = 0x400, scoped, tag = 'output window, operand 0, single buffered']
    %19 = vsyncpa [#allocation10], 0
    %20 = vsyncpa [#allocation13], 0
    %21 = vsyncpa [#allocation11], 0
    // Predicated region
    $region2: #{audio_embedding_forward.1} parent=1 // pred_check
      _
    $region3: #{audio_embedding_forward.1} parent=1 // pred_check_branch
      %23 = sbr.rel (0) target = $region5
    $region4: #{audio_embedding_forward.1} parent=1 // pred_region
      _
    $region5: #{audio_embedding_forward.1} parent=1 // pred_fallthru
      _
    // Predicated region
    $region6: #{audio_embedding_forward.1} parent=1 // pred_check
      _
    $region7: #{audio_embedding_forward.1} parent=1 // pred_check_branch
      %25 = sbr.rel (0) target = $region9
    $region8: #{audio_embedding_forward.1} parent=1 // pred_region
      _
    $region9: #{audio_embedding_forward.1} parent=1 // pred_fallthru
      _
    // Predicated region
    $region10: #{audio_embedding_forward.1} parent=1 // pred_check
      _
    $region11: #{audio_embedding_forward.1} parent=1 // pred_check_branch
      %27 = sbr.rel (0) target = $region13
    $region12: #{audio_embedding_forward.1} parent=1 // pred_region
      _
    $region13: #{audio_embedding_forward.1} parent=1 // pred_fallthru
      _
    // Predicated region
    $region14: #{audio_embedding_forward.1} parent=1 // pred_check
      _
    $region15: #{audio_embedding_forward.1} parent=1 // pred_check_branch
      %29 = sbr.rel (0) target = $region17
    $region16: #{audio_embedding_forward.1} parent=1 // pred_region
      _
    $region17: #{audio_embedding_forward.1} parent=1 // pred_fallthru
      _
    // Predicated region
    $region18: #{audio_embedding_forward.1} parent=1 // pred_check
      _
    $region19: #{audio_embedding_forward.1} parent=1 // pred_check_branch
      %31 = sbr.rel (0) target = $region21
    $region20: #{audio_embedding_forward.1} parent=1 // pred_region
      %33 = vsyncadd [#allocation10], 0
      %s34 = sshll.u32 %s4, 4
      %s35 = int_to_ptr.hbm [resolvable:$true] %s34
      %s36 = sshll.u32 [#allocation9], 4
      %s37 = int_to_ptr.vmem [resolvable:$true] %s36
      %42 = dma.hbm_to_vmem [thread:$0]  %s35, 3072, %s37, [#allocation10], 64, 64, 4
    $region21: #{audio_embedding_forward.1} parent=1 // pred_fallthru
      _
    // Predicated region
    $region22: #{audio_embedding_forward.1} parent=1 // pred_check
      _
    $region23: #{audio_embedding_forward.1} parent=1 // pred_check_branch
      %44 = sbr.rel (0) target = $region25
    $region24: #{audio_embedding_forward.1} parent=1 // pred_region
      _
    $region25: #{audio_embedding_forward.1} parent=1 // pred_fallthru
      _
    // Predicated region
    $region26: #{audio_embedding_forward.1} parent=1 // pred_check
      _
    $region27: #{audio_embedding_forward.1} parent=1 // pred_check_branch
      %46 = sbr.rel (0) target = $region29
    $region28: #{audio_embedding_forward.1} parent=1 // pred_region
      _
    $region29: #{audio_embedding_forward.1} parent=1 // pred_fallthru
      _
    // Predicated region
    $region30: #{audio_embedding_forward.1} parent=1 // pred_check
      _
    $region31: #{audio_embedding_forward.1} parent=1 // pred_check_branch
      %48 = sbr.rel (0) target = $region33
    $region32: #{audio_embedding_forward.1} parent=1 // pred_region
      %50 = vsyncadd [#allocation13], 0
      %s51 = sshll.u32 %s7, 4
      %s52 = int_to_ptr.hbm [resolvable:$true] %s51
      %s53 = sshll.u32 [#allocation12], 4
      %s54 = int_to_ptr.vmem [resolvable:$true] %s53
      %59 = dma.hbm_to_vmem [thread:$0]  %s52, 3072, %s54, [#allocation13], 64, 64, 4
    $region33: #{audio_embedding_forward.1} parent=1 // pred_fallthru
      _
    // Predicated region
    $region34: #{audio_embedding_forward.1} parent=1 // pred_check
      _
    $region35: #{audio_embedding_forward.1} parent=1 // pred_check_branch
      %61 = sbr.rel (0) target = $region37
    $region36: #{audio_embedding_forward.1} parent=1 // pred_region
      _
    $region37: #{audio_embedding_forward.1} parent=1 // pred_fallthru
      _
    // Predicated region
    $region38: #{audio_embedding_forward.1} parent=1 // pred_check
      _
    $region39: #{audio_embedding_forward.1} parent=1 // pred_check_branch
      %63 = sbr.rel (0) target = $region41
    $region40: #{audio_embedding_forward.1} parent=1 // pred_region
      _
    $region41: #{audio_embedding_forward.1} parent=1 // pred_fallthru
      _
    // Predicated region
    $region42: #{audio_embedding_forward.1} parent=1 // pred_check
      _
    $region43: #{audio_embedding_forward.1} parent=1 // pred_check_branch
      %65 = sbr.rel (0) target = $region45
    $region44: #{audio_embedding_forward.1} parent=1 // pred_region
      _
    $region45: #{audio_embedding_forward.1} parent=1 // pred_fallthru
      _
    // Predicated region
    $region46: #{audio_embedding_forward.1} parent=1 // pred_check
      _
    $region47: #{audio_embedding_forward.1} parent=1 // pred_check_branch
      %67 = sbr.rel (0) target = $region49
    $region48: #{audio_embedding_forward.1} parent=1 // pred_region
      _
    $region49: #{audio_embedding_forward.1} parent=1 // pred_fallthru
      _
    // Predicated region
    $region50: #{audio_embedding_forward.1} parent=1 // pred_check
      _
    $region51: #{audio_embedding_forward.1} parent=1 // pred_check_branch
      %69 = sbr.rel (0) target = $region53
    $region52: #{audio_embedding_forward.1} parent=1 // pred_region
      _
    $region53: #{audio_embedding_forward.1} parent=1 // pred_fallthru
      _
    // Predicated region
    $region54: #{audio_embedding_forward.1} parent=1 // pred_check
      _
    $region55: #{audio_embedding_forward.1} parent=1 // pred_check_branch
      %71 = sbr.rel (0) target = $region57
    $region56: #{audio_embedding_forward.1} parent=1 // pred_region
      _
    $region57: #{audio_embedding_forward.1} parent=1 // pred_fallthru
      _
    // Predicated region
    $region58: #{audio_embedding_forward.1} parent=1 // pred_check
      _
    $region59: #{audio_embedding_forward.1} parent=1 // pred_check_branch
      %73 = sbr.rel (0) target = $region61
    $region60: #{audio_embedding_forward.1} parent=1 // pred_region
      %75 = dma.done [#allocation10], 3072
    $region61: #{audio_embedding_forward.1} parent=1 // pred_fallthru
      _
    // Predicated region
    $region62: #{audio_embedding_forward.1} parent=1 // pred_check
      _
    $region63: #{audio_embedding_forward.1} parent=1 // pred_check_branch
      %77 = sbr.rel (0) target = $region65
    $region64: #{audio_embedding_forward.1} parent=1 // pred_region
      %79 = dma.done [#allocation13], 3072
    $region65: #{audio_embedding_forward.1} parent=1 // pred_fallthru
      _
    %v81 = vld [vmem:[%s0] sm:$0xff]
    %v82 = vld [vmem:[%s0 + $0x8] sm:$0xff]
    %v83 = vld [vmem:[%s0 + $0x10] sm:$0xff]
    %v84 = vld [vmem:[%s0 + $0x18] sm:$0xff]
    %vm85 = vcmask 130048
    %86 = vst.msk [vmem:[#allocation2] sm:$0xff] %vm85, 0.0
    %87 = vst.msk [vmem:[#allocation2 + $0x8] sm:$0xff] %vm85, 0.0
    %88 = vst.msk [vmem:[#allocation2 + $0x10] sm:$0xff] %vm85, 0.0
    %89 = vst.msk [vmem:[#allocation2 + $0x18] sm:$0xff] %vm85, 0.0
    %90 = vst.msk [vmem:[#allocation2 + $0x20] sm:$0xff] %vm85, 0.0
    %91 = vst.msk [vmem:[#allocation2 + $0x2] sm:$0xff] %vm85, %v81
    %92 = vst.msk [vmem:[#allocation2 + $0xa] sm:$0xff] %vm85, %v82
    %93 = vst.msk [vmem:[#allocation2 + $0x16] sm:$0xff] %vm85, %v83
    %94 = vst.msk [vmem:[#allocation2 + $0x1e] sm:$0xff] %vm85, %v84
    %v95 = vld [vmem:[#allocation2] ss:$2 sm:$0xff]
    %96 = vst.msk [vmem:[#allocation3] sm:$0xff] %vm85, %v95
    %s97 = scalar_lea.vmem [#allocation2], 1
    %v98 = vld [vmem:[%s97] ss:$2 sm:$0xff]
    %100 = vrot.lane.b32.xlu0 %v98, 16
    %v101 = vpop.permute.xlu0 %100
    %vm103 = vcmask 261248
    %104 = vst.msk [vmem:[#allocation3] sm:$0xff] %vm103, %v101
    %s105 = scalar_lea.vmem [#allocation2], 2
    %v106 = vld [vmem:[%s105] ss:$2 sm:$0xff]
    %108 = vrot.lane.b32.xlu0 %v106, 32
    %v109 = vpop.permute.xlu0 %108
    %vm111 = vcmask 392448
    %112 = vst.msk [vmem:[#allocation3] sm:$0xff] %vm111, %v109
    %s113 = scalar_lea.vmem [#allocation2], 3
    %v114 = vld [vmem:[%s113] ss:$2 sm:$0xff]
    %116 = vrot.lane.b32.xlu0 %v114, 48
    %v117 = vpop.permute.xlu0 %116
    %vm119 = vcmask 523648
    %120 = vst.msk [vmem:[#allocation3] sm:$0xff] %vm119, %v117
    %s121 = scalar_lea.vmem [#allocation2], 4
    %v122 = vld [vmem:[%s121] ss:$2 sm:$0xff]
    %124 = vrot.lane.b32.xlu0 %v122, 64
    %v125 = vpop.permute.xlu0 %124
    %vm127 = vcmask 654848
    %128 = vst.msk [vmem:[#allocation3] sm:$0xff] %vm127, %v125
    %s129 = scalar_lea.vmem [#allocation2], 20
    %v130 = vld [vmem:[%s129] ss:$2 sm:$0xff]
    %131 = vst.msk [vmem:[#allocation3 + $0x8] sm:$0xff] %vm85, %v130
    %s132 = scalar_lea.vmem [#allocation2], 21
    %v133 = vld [vmem:[%s132] ss:$2 sm:$0xff]
    %135 = vrot.lane.b32.xlu0 %v133, 16
    %v136 = vpop.permute.xlu0 %135
    %138 = vst.msk [vmem:[#allocation3 + $0x8] sm:$0xff] %vm103, %v136
    %s139 = scalar_lea.vmem [#allocation2], 22
    %v140 = vld [vmem:[%s139] ss:$2 sm:$0xff]
    %142 = vrot.lane.b32.xlu0 %v140, 32
    %v143 = vpop.permute.xlu0 %142
    %145 = vst.msk [vmem:[#allocation3 + $0x8] sm:$0xff] %vm111, %v143
    %s146 = scalar_lea.vmem [#allocation2], 23
    %v147 = vld [vmem:[%s146] ss:$2 sm:$0xff]
    %149 = vrot.lane.b32.xlu0 %v147, 48
    %v150 = vpop.permute.xlu0 %149
    %152 = vst.msk [vmem:[#allocation3 + $0x8] sm:$0xff] %vm119, %v150
    %s153 = scalar_lea.vmem [#allocation2], 24
    %v154 = vld [vmem:[%s153] ss:$2 sm:$0xff]
    %156 = vrot.lane.b32.xlu0 %v154, 64
    %v157 = vpop.permute.xlu0 %156
    %159 = vst.msk [vmem:[#allocation3 + $0x8] sm:$0xff] %vm127, %v157
    %v160 = vld [vmem:[#allocation3] sm:$0xff]
    %v161 = vld [vmem:[#allocation3 + $0x8] sm:$0xff]
    %v162 = vpack.c.bf16 %v161, %v160
    %v163 = vld [vmem:[%s1] sm:$0xf]
    %v164 = vld [vmem:[%s1 + $0x4] sm:$0xf]
    %v165 = vld [vmem:[%s1 + $0x8] sm:$0xf]
    %v166 = vld [vmem:[%s1 + $0xc] sm:$0xf]
    %v167 = vld [vmem:[%s1 + $0x10] sm:$0xf]
    %v168 = vld [vmem:[%s1 + $0x14] sm:$0xf]
    %v169 = vld [vmem:[%s1 + $0x18] sm:$0xf]
    %v170 = vld [vmem:[%s1 + $0x1c] sm:$0xf]
    %v171 = vld [vmem:[%s1 + $0x20] sm:$0xf]
    %v172 = vld [vmem:[%s1 + $0x24] sm:$0xf]
    %v183 = vunpack.c.l.b16 %v163
    %v184 = vunpack.c.l.b16 %v164
    %v185 = vunpack.c.l.b16 %v165
    %v186 = vunpack.c.l.b16 %v166
    %v187 = vunpack.c.l.b16 %v167
    %v188 = vunpack.c.l.b16 %v168
    %v189 = vunpack.c.l.b16 %v169
    %v190 = vunpack.c.l.b16 %v170
    %v191 = vunpack.c.l.b16 %v171
    %v192 = vunpack.c.l.b16 %v172
    %v193 = vpack.c.b16 %v184, %v183
    %v194 = vpack.c.b16 %v186, %v185
    %v195 = vpack.c.b16 %v188, %v187
    %v196 = vpack.c.b16 %v190, %v189
    %v197 = vpack.c.b16 %v192, %v191
    %vm203 = vcmask 654336
    %v205 = vsel %vm203, %v162, 0
    %207 = vmatpush.bf16.msra.mxu0 0
    %208 = vmatpush.bf16.msra.mxu0 0
    %209 = vmatpush.bf16.msra.mxu0 0
    %210 = vmatpush.bf16.msra.mxu0 %v197
    %211 = vmatpush.bf16.msra.mxu0 %v196
    %212 = vmatpush.bf16.msra.mxu0 %v195
    %213 = vmatpush.bf16.msra.mxu0 %v194
    %214 = vmatpush.bf16.msra.mxu0 %v193
    %215 = vmatmul.bf16.gmra.mxu0 %v205
    %v216 = vpop.f32.mrf.mxu0
    %v217 = vadd.f32 0.0, %v216
    %v218 = vpop.f32.mrf.mxu0
    %v219 = vadd.f32 0.0, %v218
    %220 = vdwg.mxu0
    %v221 = vld [vmem:[%s2] sm:$0x1]
    %v223 = vperm.slane %v221, 0
    %v225 = vmul.f32 %v217, %v223
    %v226 = vmul.f32 %v219, %v223
    %v227 = vld [vmem:[%s3] sm:$0x1]
    %v229 = vperm.slane %v227, 0
    %v231 = vadd.f32 %v225, %v229
    %v232 = vadd.f32 %v226, %v229
    %v233 = vmax.f32 %v231, 0.0
    %v234 = vmax.f32 %v232, 0.0
    %235 = vst [vmem:[#allocation4] sm:$0xff] 0.0
    %236 = vst [vmem:[#allocation4 + $0x8] sm:$0xff] 0.0
    %237 = vst [vmem:[#allocation4 + $0x10] sm:$0xf] 0.0
    %238 = vst [vmem:[#allocation4 + $0x1] sm:$0xff] %v233
    %239 = vst [vmem:[#allocation4 + $0xb] sm:$0xff] %v234
    %v240 = vld [vmem:[#allocation4] ss:$2 sm:$0xf]
    %241 = vst [vmem:[#allocation5] sm:$0xf] %v240
    %s242 = scalar_lea.vmem [#allocation4], 1
    %v243 = vld [vmem:[%s242] ss:$2 sm:$0xf]
    %244 = vst [vmem:[#allocation5 + $0x8] sm:$0xf] %v243
    %s245 = scalar_lea.vmem [#allocation4], 2
    %v246 = vld [vmem:[%s245] ss:$2 sm:$0xf]
    %247 = vst [vmem:[#allocation5 + $0x10] sm:$0xf] %v246
    %s248 = scalar_lea.vmem [#allocation4], 10
    %v249 = vld [vmem:[%s248] ss:$2 sm:$0xf]
    %v251 = vrot.slane %v249, 4
    %253 = vst [vmem:[#allocation5] sm:$0xf0] %v251
    %s254 = scalar_lea.vmem [#allocation4], 11
    %v255 = vld [vmem:[%s254] ss:$2 sm:$0xf]
    %v257 = vrot.slane %v255, 4
    %259 = vst [vmem:[#allocation5 + $0x8] sm:$0xf0] %v257
    %s260 = scalar_lea.vmem [#allocation4], 12
    %v261 = vld [vmem:[%s260] ss:$2 sm:$0xf]
    %v263 = vrot.slane %v261, 4
    %265 = vst [vmem:[#allocation5 + $0x10] sm:$0xf0] %v263
    %v266 = vld [vmem:[#allocation5] sm:$0xff]
    %v267 = vld [vmem:[#allocation5 + $0x8] sm:$0xff]
    %v268 = vld [vmem:[#allocation5 + $0x10] sm:$0xff]
    %v269 = vpack.c.bf16 %v266, %v266
    %v270 = vpack.c.bf16 %v267, %v267
    %v271 = vpack.c.bf16 %v268, %v268
    %v272 = vld [vmem:[#allocation9] sm:$0xf]
    %v273 = vld [vmem:[#allocation9 + $0x4] sm:$0xf]
    %v274 = vld [vmem:[#allocation9 + $0x8] sm:$0xf]
    %v275 = vld [vmem:[#allocation9 + $0xc] sm:$0xf]
    %v276 = vld [vmem:[#allocation9 + $0x10] sm:$0xf]
    %v277 = vld [vmem:[#allocation9 + $0x14] sm:$0xf]
    %v278 = vld [vmem:[#allocation9 + $0x18] sm:$0xf]
    %v279 = vld [vmem:[#allocation9 + $0x1c] sm:$0xf]
    %v280 = vld [vmem:[#allocation9 + $0x20] sm:$0xf]
    %v281 = vld [vmem:[#allocation9 + $0x24] sm:$0xf]
    %v282 = vld [vmem:[#allocation9 + $0x28] sm:$0xf]
    %v283 = vld [vmem:[#allocation9 + $0x2c] sm:$0xf]
    %v284 = vld [vmem:[#allocation9 + $0x30] sm:$0xf]
    %v285 = vld [vmem:[#allocation9 + $0x34] sm:$0xf]
    %v286 = vld [vmem:[#allocation9 + $0x38] sm:$0xf]
    %v287 = vld [vmem:[#allocation9 + $0x3c] sm:$0xf]
    %v288 = vld [vmem:[#allocation9 + $0x40] sm:$0xf]
    %v289 = vld [vmem:[#allocation9 + $0x44] sm:$0xf]
    %v290 = vld [vmem:[#allocation9 + $0x48] sm:$0xf]
    %v291 = vld [vmem:[#allocation9 + $0x4c] sm:$0xf]
    %v292 = vld [vmem:[#allocation9 + $0x50] sm:$0xf]
    %v293 = vld [vmem:[#allocation9 + $0x54] sm:$0xf]
    %v294 = vld [vmem:[#allocation9 + $0x58] sm:$0xf]
    %v295 = vld [vmem:[#allocation9 + $0x5c] sm:$0xf]
    %v296 = vld [vmem:[#allocation9 + $0x60] sm:$0xf]
    %v297 = vld [vmem:[#allocation9 + $0x64] sm:$0xf]
    %v298 = vld [vmem:[#allocation9 + $0x68] sm:$0xf]
    %v299 = vld [vmem:[#allocation9 + $0x6c] sm:$0xf]
    %v300 = vld [vmem:[#allocation9 + $0x70] sm:$0xf]
    %v301 = vld [vmem:[#allocation9 + $0x74] sm:$0xf]
    %v302 = vld [vmem:[#allocation9 + $0x78] sm:$0xf]
    %v303 = vld [vmem:[#allocation9 + $0x7c] sm:$0xf]
    %v304 = vld [vmem:[#allocation9 + $0x80] sm:$0xf]
    %v305 = vld [vmem:[#allocation9 + $0x84] sm:$0xf]
    %v306 = vld [vmem:[#allocation9 + $0x88] sm:$0xf]
    %v307 = vld [vmem:[#allocation9 + $0x8c] sm:$0xf]
    %v308 = vld [vmem:[#allocation9 + $0x90] sm:$0xf]
    %v309 = vld [vmem:[#allocation9 + $0x94] sm:$0xf]
    %v310 = vld [vmem:[#allocation9 + $0x98] sm:$0xf]
    %v311 = vld [vmem:[#allocation9 + $0x9c] sm:$0xf]
    %v312 = vld [vmem:[#allocation9 + $0xa0] sm:$0xf]
    %v313 = vld [vmem:[#allocation9 + $0xa4] sm:$0xf]
    %v314 = vld [vmem:[#allocation9 + $0xa8] sm:$0xf]
    %v315 = vld [vmem:[#allocation9 + $0xac] sm:$0xf]
    %v316 = vld [vmem:[#allocation9 + $0xb0] sm:$0xf]
    %v317 = vld [vmem:[#allocation9 + $0xb4] sm:$0xf]
    %v318 = vld [vmem:[#allocation9 + $0xb8] sm:$0xf]
    %v319 = vld [vmem:[#allocation9 + $0xbc] sm:$0xf]
    %v368 = vunpack.c.l.b16 %v272
    %v369 = vunpack.c.l.b16 %v273
    %v370 = vunpack.c.l.b16 %v274
    %v371 = vunpack.c.l.b16 %v275
    %v372 = vunpack.c.l.b16 %v276
    %v373 = vunpack.c.l.b16 %v277
    %v374 = vunpack.c.l.b16 %v278
    %v375 = vunpack.c.l.b16 %v279
    %v376 = vunpack.c.l.b16 %v280
    %v377 = vunpack.c.l.b16 %v281
    %v378 = vunpack.c.l.b16 %v282
    %v379 = vunpack.c.l.b16 %v283
    %v380 = vunpack.c.l.b16 %v284
    %v381 = vunpack.c.l.b16 %v285
    %v382 = vunpack.c.l.b16 %v286
    %v383 = vunpack.c.l.b16 %v287
    %v384 = vunpack.c.l.b16 %v288
    %v385 = vunpack.c.l.b16 %v289
    %v386 = vunpack.c.l.b16 %v290
    %v387 = vunpack.c.l.b16 %v291
    %v388 = vunpack.c.l.b16 %v292
    %v389 = vunpack.c.l.b16 %v293
    %v390 = vunpack.c.l.b16 %v294
    %v391 = vunpack.c.l.b16 %v295
    %v392 = vunpack.c.l.b16 %v296
    %v393 = vunpack.c.l.b16 %v297
    %v394 = vunpack.c.l.b16 %v298
    %v395 = vunpack.c.l.b16 %v299
    %v396 = vunpack.c.l.b16 %v300
    %v397 = vunpack.c.l.b16 %v301
    %v398 = vunpack.c.l.b16 %v302
    %v399 = vunpack.c.l.b16 %v303
    %v400 = vunpack.c.l.b16 %v304
    %v401 = vunpack.c.l.b16 %v305
    %v402 = vunpack.c.l.b16 %v306
    %v403 = vunpack.c.l.b16 %v307
    %v404 = vunpack.c.l.b16 %v308
    %v405 = vunpack.c.l.b16 %v309
    %v406 = vunpack.c.l.b16 %v310
    %v407 = vunpack.c.l.b16 %v311
    %v408 = vunpack.c.l.b16 %v312
    %v409 = vunpack.c.l.b16 %v313
    %v410 = vunpack.c.l.b16 %v314
    %v411 = vunpack.c.l.b16 %v315
    %v412 = vunpack.c.l.b16 %v316
    %v413 = vunpack.c.l.b16 %v317
    %v414 = vunpack.c.l.b16 %v318
    %v415 = vunpack.c.l.b16 %v319
    %v416 = vpack.c.b16 %v369, %v368
    %v417 = vpack.c.b16 %v371, %v370
    %v418 = vpack.c.b16 %v373, %v372
    %v419 = vpack.c.b16 %v375, %v374
    %v420 = vpack.c.b16 %v377, %v376
    %v421 = vpack.c.b16 %v379, %v378
    %v422 = vpack.c.b16 %v381, %v380
    %v423 = vpack.c.b16 %v383, %v382
    %v424 = vpack.c.b16 %v385, %v384
    %v425 = vpack.c.b16 %v387, %v386
    %v426 = vpack.c.b16 %v389, %v388
    %v427 = vpack.c.b16 %v391, %v390
    %v428 = vpack.c.b16 %v393, %v392
    %v429 = vpack.c.b16 %v395, %v394
    %v430 = vpack.c.b16 %v397, %v396
    %v431 = vpack.c.b16 %v399, %v398
    %v432 = vpack.c.b16 %v401, %v400
    %v433 = vpack.c.b16 %v403, %v402
    %v434 = vpack.c.b16 %v405, %v404
    %v435 = vpack.c.b16 %v407, %v406
    %v436 = vpack.c.b16 %v409, %v408
    %v437 = vpack.c.b16 %v411, %v410
    %v438 = vpack.c.b16 %v413, %v412
    %v439 = vpack.c.b16 %v415, %v414
    %464 = vmatpush.bf16.msra.mxu0 %v423
    %465 = vmatpush.bf16.msra.mxu0 %v422
    %466 = vmatpush.bf16.msra.mxu0 %v421
    %467 = vmatpush.bf16.msra.mxu0 %v420
    %468 = vmatpush.bf16.msra.mxu0 %v419
    %469 = vmatpush.bf16.msra.mxu0 %v418
    %470 = vmatpush.bf16.msra.mxu0 %v417
    %471 = vmatpush.bf16.msra.mxu0 %v416
    %472 = vmatmul.bf16.gmra.mxu0 %v269
    %v473 = vpop.f32.mrf.mxu0
    %v474 = vadd.f32 0.0, %v473
    %v475 = vpop.f32.mrf.mxu0
    %476 = vdwg.mxu0
    %477 = vmatpush.bf16.msra.mxu0 %v431
    %478 = vmatpush.bf16.msra.mxu0 %v430
    %479 = vmatpush.bf16.msra.mxu0 %v429
    %480 = vmatpush.bf16.msra.mxu0 %v428
    %481 = vmatpush.bf16.msra.mxu0 %v427
    %482 = vmatpush.bf16.msra.mxu0 %v426
    %483 = vmatpush.bf16.msra.mxu0 %v425
    %484 = vmatpush.bf16.msra.mxu0 %v424
    %485 = vmatmul.bf16.gmra.mxu0 %v270
    %v486 = vpop.f32.mrf.mxu0
    %v487 = vadd.f32 %v474, %v486
    %v488 = vpop.f32.mrf.mxu0
    %489 = vdwg.mxu0
    %490 = vmatpush.bf16.msra.mxu0 %v439
    %491 = vmatpush.bf16.msra.mxu0 %v438
    %492 = vmatpush.bf16.msra.mxu0 %v437
    %493 = vmatpush.bf16.msra.mxu0 %v436
    %494 = vmatpush.bf16.msra.mxu0 %v435
    %495 = vmatpush.bf16.msra.mxu0 %v434
    %496 = vmatpush.bf16.msra.mxu0 %v433
    %497 = vmatpush.bf16.msra.mxu0 %v432
    %498 = vmatmul.bf16.gmra.mxu0 %v271
    %v499 = vpop.f32.mrf.mxu0
    %v500 = vadd.f32 %v487, %v499
    %v501 = vpop.f32.mrf.mxu0
    %502 = vdwg.mxu0
    %v503 = vld [vmem:[%s5] sm:$0x1]
    %v505 = vperm.slane %v503, 0
    %v507 = vmul.f32 %v500, %v505
    %v508 = vld [vmem:[%s6] sm:$0x1]
    %v510 = vperm.slane %v508, 0
    %v512 = vadd.f32 %v507, %v510
    %v513 = vmax.f32 %v512, 0.0
    %514 = vst [vmem:[#allocation6] sm:$0xff] 0.0
    %515 = vst [vmem:[#allocation6 + $0x8] sm:$0xf] 0.0
    %516 = vst [vmem:[#allocation6 + $0x1] sm:$0xf] %v513
    %517 = vst [vmem:[#allocation6 + $0x3] sm:$0xf0] %v513
    %v518 = vld [vmem:[#allocation6] ss:$2 sm:$0x3]
    %519 = vst [vmem:[#allocation7] sm:$0x3] %v518
    %s520 = scalar_lea.vmem [#allocation6], 1
    %v521 = vld [vmem:[%s520] ss:$2 sm:$0x3]
    %522 = vst [vmem:[#allocation7 + $0x4] sm:$0x3] %v521
    %s523 = scalar_lea.vmem [#allocation6], 2
    %v524 = vld [vmem:[%s523] ss:$2 sm:$0x3]
    %525 = vst [vmem:[#allocation7 + $0x8] sm:$0x3] %v524
    %s526 = scalar_lea.vmem [#allocation6], 6
    %v527 = vld [vmem:[%s526] ss:$2 sm:$0x3]
    %v529 = vrot.slane %v527, 6
    %531 = vst [vmem:[#allocation7] sm:$0xc] %v529
    %s532 = scalar_lea.vmem [#allocation6], 7
    %v533 = vld [vmem:[%s532] ss:$2 sm:$0x3]
    %v535 = vrot.slane %v533, 6
    %537 = vst [vmem:[#allocation7 + $0x4] sm:$0xc] %v535
    %s538 = scalar_lea.vmem [#allocation6], 8
    %v539 = vld [vmem:[%s538] ss:$2 sm:$0x3]
    %v541 = vrot.slane %v539, 6
    %543 = vst [vmem:[#allocation7 + $0x8] sm:$0xc] %v541
    %v544 = vld [vmem:[#allocation7] sm:$0xff]
    %v545 = vld [vmem:[#allocation7 + $0x8] sm:$0xf]
    %548 = vst [vmem:[#allocation1] ss:$2 sm:$0xff] %v544
    %s549 = scalar_lea.vmem [#allocation1], 16
    %550 = vst [vmem:[%s549] ss:$2 sm:$0xff] %v545
    %v551 = vld.sshfl [vmem:[#allocation1] sm:$0xff pattern:$0x75316420]
    %v552 = vld.sshfl [vmem:[#allocation1 + $0x8] sm:$0xff pattern:$0x75316420]
    %v553 = vld.sshfl [vmem:[#allocation1 + $0x10] sm:$0xff pattern:$0x75316420]
    %v557 = vpack.c.bf16 %v551, %v551
    %v558 = vpack.c.bf16 %v552, %v552
    %v559 = vpack.c.bf16 %v553, %v553
    %v560 = vld [vmem:[#allocation12] sm:$0xf]
    %v561 = vld [vmem:[#allocation12 + $0x4] sm:$0xf]
    %v562 = vld [vmem:[#allocation12 + $0x8] sm:$0xf]
    %v563 = vld [vmem:[#allocation12 + $0xc] sm:$0xf]
    %v564 = vld [vmem:[#allocation12 + $0x10] sm:$0xf]
    %v565 = vld [vmem:[#allocation12 + $0x14] sm:$0xf]
    %v566 = vld [vmem:[#allocation12 + $0x18] sm:$0xf]
    %v567 = vld [vmem:[#allocation12 + $0x1c] sm:$0xf]
    %v568 = vld [vmem:[#allocation12 + $0x20] sm:$0xf]
    %v569 = vld [vmem:[#allocation12 + $0x24] sm:$0xf]
    %v570 = vld [vmem:[#allocation12 + $0x28] sm:$0xf]
    %v571 = vld [vmem:[#allocation12 + $0x2c] sm:$0xf]
    %v572 = vld [vmem:[#allocation12 + $0x30] sm:$0xf]
    %v573 = vld [vmem:[#allocation12 + $0x34] sm:$0xf]
    %v574 = vld [vmem:[#allocation12 + $0x38] sm:$0xf]
    %v575 = vld [vmem:[#allocation12 + $0x3c] sm:$0xf]
    %v576 = vld [vmem:[#allocation12 + $0x40] sm:$0xf]
    %v577 = vld [vmem:[#allocation12 + $0x44] sm:$0xf]
    %v578 = vld [vmem:[#allocation12 + $0x48] sm:$0xf]
    %v579 = vld [vmem:[#allocation12 + $0x4c] sm:$0xf]
    %v580 = vld [vmem:[#allocation12 + $0x50] sm:$0xf]
    %v581 = vld [vmem:[#allocation12 + $0x54] sm:$0xf]
    %v582 = vld [vmem:[#allocation12 + $0x58] sm:$0xf]
    %v583 = vld [vmem:[#allocation12 + $0x5c] sm:$0xf]
    %v584 = vld [vmem:[#allocation12 + $0x60] sm:$0xf]
    %v585 = vld [vmem:[#allocation12 + $0x64] sm:$0xf]
    %v586 = vld [vmem:[#allocation12 + $0x68] sm:$0xf]
    %v587 = vld [vmem:[#allocation12 + $0x6c] sm:$0xf]
    %v588 = vld [vmem:[#allocation12 + $0x70] sm:$0xf]
    %v589 = vld [vmem:[#allocation12 + $0x74] sm:$0xf]
    %v590 = vld [vmem:[#allocation12 + $0x78] sm:$0xf]
    %v591 = vld [vmem:[#allocation12 + $0x7c] sm:$0xf]
    %v592 = vld [vmem:[#allocation12 + $0x80] sm:$0xf]
    %v593 = vld [vmem:[#allocation12 + $0x84] sm:$0xf]
    %v594 = vld [vmem:[#allocation12 + $0x88] sm:$0xf]
    %v595 = vld [vmem:[#allocation12 + $0x8c] sm:$0xf]
    %v596 = vld [vmem:[#allocation12 + $0x90] sm:$0xf]
    %v597 = vld [vmem:[#allocation12 + $0x94] sm:$0xf]
    %v598 = vld [vmem:[#allocation12 + $0x98] sm:$0xf]
    %v599 = vld [vmem:[#allocation12 + $0x9c] sm:$0xf]
    %v600 = vld [vmem:[#allocation12 + $0xa0] sm:$0xf]
    %v601 = vld [vmem:[#allocation12 + $0xa4] sm:$0xf]
    %v602 = vld [vmem:[#allocation12 + $0xa8] sm:$0xf]
    %v603 = vld [vmem:[#allocation12 + $0xac] sm:$0xf]
    %v604 = vld [vmem:[#allocation12 + $0xb0] sm:$0xf]
    %v605 = vld [vmem:[#allocation12 + $0xb4] sm:$0xf]
    %v606 = vld [vmem:[#allocation12 + $0xb8] sm:$0xf]
    %v607 = vld [vmem:[#allocation12 + $0xbc] sm:$0xf]
    %v656 = vunpack.c.l.b16 %v560
    %v657 = vunpack.c.l.b16 %v561
    %v658 = vunpack.c.l.b16 %v562
    %v659 = vunpack.c.l.b16 %v563
    %v660 = vunpack.c.l.b16 %v564
    %v661 = vunpack.c.l.b16 %v565
    %v662 = vunpack.c.l.b16 %v566
    %v663 = vunpack.c.l.b16 %v567
    %v664 = vunpack.c.l.b16 %v568
    %v665 = vunpack.c.l.b16 %v569
    %v666 = vunpack.c.l.b16 %v570
    %v667 = vunpack.c.l.b16 %v571
    %v668 = vunpack.c.l.b16 %v572
    %v669 = vunpack.c.l.b16 %v573
    %v670 = vunpack.c.l.b16 %v574
    %v671 = vunpack.c.l.b16 %v575
    %v672 = vunpack.c.l.b16 %v576
    %v673 = vunpack.c.l.b16 %v577
    %v674 = vunpack.c.l.b16 %v578
    %v675 = vunpack.c.l.b16 %v579
    %v676 = vunpack.c.l.b16 %v580
    %v677 = vunpack.c.l.b16 %v581
    %v678 = vunpack.c.l.b16 %v582
    %v679 = vunpack.c.l.b16 %v583
    %v680 = vunpack.c.l.b16 %v584
    %v681 = vunpack.c.l.b16 %v585
    %v682 = vunpack.c.l.b16 %v586
    %v683 = vunpack.c.l.b16 %v587
    %v684 = vunpack.c.l.b16 %v588
    %v685 = vunpack.c.l.b16 %v589
    %v686 = vunpack.c.l.b16 %v590
    %v687 = vunpack.c.l.b16 %v591
    %v688 = vunpack.c.l.b16 %v592
    %v689 = vunpack.c.l.b16 %v593
    %v690 = vunpack.c.l.b16 %v594
    %v691 = vunpack.c.l.b16 %v595
    %v692 = vunpack.c.l.b16 %v596
    %v693 = vunpack.c.l.b16 %v597
    %v694 = vunpack.c.l.b16 %v598
    %v695 = vunpack.c.l.b16 %v599
    %v696 = vunpack.c.l.b16 %v600
    %v697 = vunpack.c.l.b16 %v601
    %v698 = vunpack.c.l.b16 %v602
    %v699 = vunpack.c.l.b16 %v603
    %v700 = vunpack.c.l.b16 %v604
    %v701 = vunpack.c.l.b16 %v605
    %v702 = vunpack.c.l.b16 %v606
    %v703 = vunpack.c.l.b16 %v607
    %v704 = vpack.c.b16 %v657, %v656
    %v705 = vpack.c.b16 %v659, %v658
    %v706 = vpack.c.b16 %v661, %v660
    %v707 = vpack.c.b16 %v663, %v662
    %v708 = vpack.c.b16 %v665, %v664
    %v709 = vpack.c.b16 %v667, %v666
    %v710 = vpack.c.b16 %v669, %v668
    %v711 = vpack.c.b16 %v671, %v670
    %v712 = vpack.c.b16 %v673, %v672
    %v713 = vpack.c.b16 %v675, %v674
    %v714 = vpack.c.b16 %v677, %v676
    %v715 = vpack.c.b16 %v679, %v678
    %v716 = vpack.c.b16 %v681, %v680
    %v717 = vpack.c.b16 %v683, %v682
    %v718 = vpack.c.b16 %v685, %v684
    %v719 = vpack.c.b16 %v687, %v686
    %v720 = vpack.c.b16 %v689, %v688
    %v721 = vpack.c.b16 %v691, %v690
    %v722 = vpack.c.b16 %v693, %v692
    %v723 = vpack.c.b16 %v695, %v694
    %v724 = vpack.c.b16 %v697, %v696
    %v725 = vpack.c.b16 %v699, %v698
    %v726 = vpack.c.b16 %v701, %v700
    %v727 = vpack.c.b16 %v703, %v702
    %752 = vmatpush.bf16.msra.mxu0 %v711
    %753 = vmatpush.bf16.msra.mxu0 %v710
    %754 = vmatpush.bf16.msra.mxu0 %v709
    %755 = vmatpush.bf16.msra.mxu0 %v708
    %756 = vmatpush.bf16.msra.mxu0 %v707
    %757 = vmatpush.bf16.msra.mxu0 %v706
    %758 = vmatpush.bf16.msra.mxu0 %v705
    %759 = vmatpush.bf16.msra.mxu0 %v704
    %760 = vmatmul.bf16.gmra.mxu0 %v557
    %v761 = vpop.f32.mrf.mxu0
    %v762 = vadd.f32 0.0, %v761
    %v763 = vpop.f32.mrf.mxu0
    %764 = vdwg.mxu0
    %765 = vmatpush.bf16.msra.mxu0 %v719
    %766 = vmatpush.bf16.msra.mxu0 %v718
    %767 = vmatpush.bf16.msra.mxu0 %v717
    %768 = vmatpush.bf16.msra.mxu0 %v716
    %769 = vmatpush.bf16.msra.mxu0 %v715
    %770 = vmatpush.bf16.msra.mxu0 %v714
    %771 = vmatpush.bf16.msra.mxu0 %v713
    %772 = vmatpush.bf16.msra.mxu0 %v712
    %773 = vmatmul.bf16.gmra.mxu0 %v558
    %v774 = vpop.f32.mrf.mxu0
    %v775 = vadd.f32 %v762, %v774
    %v776 = vpop.f32.mrf.mxu0
    %777 = vdwg.mxu0
    %778 = vmatpush.bf16.msra.mxu0 %v727
    %779 = vmatpush.bf16.msra.mxu0 %v726
    %780 = vmatpush.bf16.msra.mxu0 %v725
    %781 = vmatpush.bf16.msra.mxu0 %v724
    %782 = vmatpush.bf16.msra.mxu0 %v723
    %783 = vmatpush.bf16.msra.mxu0 %v722
    %784 = vmatpush.bf16.msra.mxu0 %v721
    %785 = vmatpush.bf16.msra.mxu0 %v720
    %786 = vmatmul.bf16.gmra.mxu0 %v559
    %v787 = vpop.f32.mrf.mxu0
    %v788 = vadd.f32 %v775, %v787
    %v789 = vpop.f32.mrf.mxu0
    %790 = vdwg.mxu0
    %v791 = vld [vmem:[%s8] sm:$0x1]
    %v793 = vperm.slane %v791, 0
    %v795 = vmul.f32 %v788, %v793
    %v796 = vld [vmem:[%s9] sm:$0x1]
    %v798 = vperm.slane %v796, 0
    %v800 = vadd.f32 %v795, %v798
    %v801 = vmax.f32 %v800, 0.0
    %802 = vst [vmem:[#allocation8] sm:$0x1] %v801
    %v804 = vrot.slane %v801, 7
    %v805 = vrot.slane %v804, 2
    %807 = vst [vmem:[#allocation8 + $0x2] sm:$0x1] %v805
    %808 = vst.sshfl [vmem:[#allocation1] sm:$0xff pattern:$0x73625140] %v801
    %s809 = scalar_lea.vmem [#allocation1], 1
    %v810 = vld [vmem:[%s809] ss:$4 sm:$0xff]
    %812 = vst [vmem:[#allocation8 + $0x1] sm:$0x1] %v810
    %813 = vst.sshfl [vmem:[#allocation1] sm:$0xff pattern:$0x73625140] %v801
    %s814 = scalar_lea.vmem [#allocation1], 1
    %v815 = vld [vmem:[%s814] ss:$4 sm:$0xff]
    %v816 = vrot.slane %v815, 7
    %v817 = vrot.slane %v816, 2
    %819 = vst [vmem:[#allocation8 + $0x3] sm:$0x1] %v817
    %v820 = vld [vmem:[#allocation8] sm:$0xf]
    %822 = vst [vmem:[#allocation1] ss:$4 sm:$0xff] %v820
    %v823 = vld.sshfl [vmem:[#allocation1] sm:$0xff pattern:$0x73625140]
    %v824 = vld.sshfl [vmem:[#allocation1 + $0x8] sm:$0xff pattern:$0x73625140]
    %v827 = vpack.c.bf16 %v823, %v823
    %v828 = vpack.c.bf16 %v824, %v824
    %v829 = vld [vmem:[%s10] sm:$0xff]
    %v830 = vld [vmem:[%s10 + $0x8] sm:$0xff]
    %v831 = vld [vmem:[%s10 + $0x10] sm:$0xff]
    %v832 = vld [vmem:[%s10 + $0x18] sm:$0xff]
    %v833 = vld [vmem:[%s10 + $0x20] sm:$0xff]
    %v834 = vld [vmem:[%s10 + $0x28] sm:$0xff]
    %v835 = vld [vmem:[%s10 + $0x30] sm:$0xff]
    %v836 = vld [vmem:[%s10 + $0x38] sm:$0xff]
    %v837 = vld [vmem:[%s10 + $0x40] sm:$0xff]
    %v838 = vld [vmem:[%s10 + $0x48] sm:$0xff]
    %v839 = vld [vmem:[%s10 + $0x50] sm:$0xff]
    %v840 = vld [vmem:[%s10 + $0x58] sm:$0xff]
    %v841 = vld [vmem:[%s10 + $0x60] sm:$0xff]
    %v842 = vld [vmem:[%s10 + $0x68] sm:$0xff]
    %v843 = vld [vmem:[%s10 + $0x70] sm:$0xff]
    %v844 = vld [vmem:[%s10 + $0x78] sm:$0xff]
    %v845 = vld [vmem:[%s10 + $0x80] sm:$0xff]
    %v846 = vld [vmem:[%s10 + $0x88] sm:$0xff]
    %v847 = vld [vmem:[%s10 + $0x90] sm:$0xff]
    %v848 = vld [vmem:[%s10 + $0x98] sm:$0xff]
    %v849 = vld [vmem:[%s10 + $0xa0] sm:$0xff]
    %v850 = vld [vmem:[%s10 + $0xa8] sm:$0xff]
    %v851 = vld [vmem:[%s10 + $0xb0] sm:$0xff]
    %v852 = vld [vmem:[%s10 + $0xb8] sm:$0xff]
    %v853 = vld [vmem:[%s10 + $0xc0] sm:$0xff]
    %v854 = vld [vmem:[%s10 + $0xc8] sm:$0xff]
    %v855 = vld [vmem:[%s10 + $0xd0] sm:$0xff]
    %v856 = vld [vmem:[%s10 + $0xd8] sm:$0xff]
    %v857 = vld [vmem:[%s10 + $0xe0] sm:$0xff]
    %v858 = vld [vmem:[%s10 + $0xe8] sm:$0xff]
    %v859 = vld [vmem:[%s10 + $0xf0] sm:$0xff]
    %v860 = vld [vmem:[%s10 + $0xf8] sm:$0xff]
    %v861 = vld [vmem:[%s10 + $0x100] sm:$0xff]
    %v862 = vld [vmem:[%s10 + $0x108] sm:$0xff]
    %v863 = vld [vmem:[%s10 + $0x110] sm:$0xff]
    %v864 = vld [vmem:[%s10 + $0x118] sm:$0xff]
    %v865 = vld [vmem:[%s10 + $0x120] sm:$0xff]
    %v866 = vld [vmem:[%s10 + $0x128] sm:$0xff]
    %v867 = vld [vmem:[%s10 + $0x130] sm:$0xff]
    %v868 = vld [vmem:[%s10 + $0x138] sm:$0xff]
    %v869 = vld [vmem:[%s10 + $0x140] sm:$0xff]
    %v870 = vld [vmem:[%s10 + $0x148] sm:$0xff]
    %v871 = vld [vmem:[%s10 + $0x150] sm:$0xff]
    %v872 = vld [vmem:[%s10 + $0x158] sm:$0xff]
    %v873 = vld [vmem:[%s10 + $0x160] sm:$0xff]
    %v874 = vld [vmem:[%s10 + $0x168] sm:$0xff]
    %v875 = vld [vmem:[%s10 + $0x170] sm:$0xff]
    %v876 = vld [vmem:[%s10 + $0x178] sm:$0xff]
    %v877 = vld [vmem:[%s10 + $0x180] sm:$0xff]
    %v878 = vld [vmem:[%s10 + $0x188] sm:$0xff]
    %v879 = vld [vmem:[%s10 + $0x190] sm:$0xff]
    %v880 = vld [vmem:[%s10 + $0x198] sm:$0xff]
    %v881 = vld [vmem:[%s10 + $0x1a0] sm:$0xff]
    %v882 = vld [vmem:[%s10 + $0x1a8] sm:$0xff]
    %v883 = vld [vmem:[%s10 + $0x1b0] sm:$0xff]
    %v884 = vld [vmem:[%s10 + $0x1b8] sm:$0xff]
    %v885 = vld [vmem:[%s10 + $0x1c0] sm:$0xff]
    %v886 = vld [vmem:[%s10 + $0x1c8] sm:$0xff]
    %v887 = vld [vmem:[%s10 + $0x1d0] sm:$0xff]
    %v888 = vld [vmem:[%s10 + $0x1d8] sm:$0xff]
    %v889 = vld [vmem:[%s10 + $0x1e0] sm:$0xff]
    %v890 = vld [vmem:[%s10 + $0x1e8] sm:$0xff]
    %v891 = vld [vmem:[%s10 + $0x1f0] sm:$0xff]
    %v892 = vld [vmem:[%s10 + $0x1f8] sm:$0xff]
    %v893 = vld [vmem:[%s11] sm:$0xf]
    %v895 = vperm.slane %v893, 0
    %v896 = vperm.slane %v893, 1
    %v897 = vperm.slane %v893, 2
    %v898 = vperm.slane %v893, 3
    %v967 = vunpack.c.l.b16 %v829
    %v968 = vunpack.c.h.b16 %v829
    %v969 = vunpack.c.l.b16 %v830
    %v970 = vunpack.c.h.b16 %v830
    %v971 = vunpack.c.l.b16 %v831
    %v972 = vunpack.c.h.b16 %v831
    %v973 = vunpack.c.l.b16 %v832
    %v974 = vunpack.c.h.b16 %v832
    %v975 = vunpack.c.l.b16 %v833
    %v976 = vunpack.c.h.b16 %v833
    %v977 = vunpack.c.l.b16 %v834
    %v978 = vunpack.c.h.b16 %v834
    %v979 = vunpack.c.l.b16 %v835
    %v980 = vunpack.c.h.b16 %v835
    %v981 = vunpack.c.l.b16 %v836
    %v982 = vunpack.c.h.b16 %v836
    %v983 = vunpack.c.l.b16 %v837
    %v984 = vunpack.c.h.b16 %v837
    %v985 = vunpack.c.l.b16 %v838
    %v986 = vunpack.c.h.b16 %v838
    %v987 = vunpack.c.l.b16 %v839
    %v988 = vunpack.c.h.b16 %v839
    %v989 = vunpack.c.l.b16 %v840
    %v990 = vunpack.c.h.b16 %v840
    %v991 = vunpack.c.l.b16 %v841
    %v992 = vunpack.c.h.b16 %v841
    %v993 = vunpack.c.l.b16 %v842
    %v994 = vunpack.c.h.b16 %v842
    %v995 = vunpack.c.l.b16 %v843
    %v996 = vunpack.c.h.b16 %v843
    %v997 = vunpack.c.l.b16 %v844
    %v998 = vunpack.c.h.b16 %v844
    %v999 = vunpack.c.l.b16 %v845
    %v1000 = vunpack.c.h.b16 %v845
    %v1001 = vunpack.c.l.b16 %v846
    %v1002 = vunpack.c.h.b16 %v846
    %v1003 = vunpack.c.l.b16 %v847
    %v1004 = vunpack.c.h.b16 %v847
    %v1005 = vunpack.c.l.b16 %v848
    %v1006 = vunpack.c.h.b16 %v848
    %v1007 = vunpack.c.l.b16 %v849
    %v1008 = vunpack.c.h.b16 %v849
    %v1009 = vunpack.c.l.b16 %v850
    %v1010 = vunpack.c.h.b16 %v850
    %v1011 = vunpack.c.l.b16 %v851
    %v1012 = vunpack.c.h.b16 %v851
    %v1013 = vunpack.c.l.b16 %v852
    %v1014 = vunpack.c.h.b16 %v852
    %v1015 = vunpack.c.l.b16 %v853
    %v1016 = vunpack.c.h.b16 %v853
    %v1017 = vunpack.c.l.b16 %v854
    %v1018 = vunpack.c.h.b16 %v854
    %v1019 = vunpack.c.l.b16 %v855
    %v1020 = vunpack.c.h.b16 %v855
    %v1021 = vunpack.c.l.b16 %v856
    %v1022 = vunpack.c.h.b16 %v856
    %v1023 = vunpack.c.l.b16 %v857
    %v1024 = vunpack.c.h.b16 %v857
    %v1025 = vunpack.c.l.b16 %v858
    %v1026 = vunpack.c.h.b16 %v858
    %v1027 = vunpack.c.l.b16 %v859
    %v1028 = vunpack.c.h.b16 %v859
    %v1029 = vunpack.c.l.b16 %v860
    %v1030 = vunpack.c.h.b16 %v860
    %v1031 = vunpack.c.l.b16 %v861
    %v1032 = vunpack.c.h.b16 %v861
    %v1033 = vunpack.c.l.b16 %v862
    %v1034 = vunpack.c.h.b16 %v862
    %v1035 = vunpack.c.l.b16 %v863
    %v1036 = vunpack.c.h.b16 %v863
    %v1037 = vunpack.c.l.b16 %v864
    %v1038 = vunpack.c.h.b16 %v864
    %v1039 = vunpack.c.l.b16 %v865
    %v1040 = vunpack.c.h.b16 %v865
    %v1041 = vunpack.c.l.b16 %v866
    %v1042 = vunpack.c.h.b16 %v866
    %v1043 = vunpack.c.l.b16 %v867
    %v1044 = vunpack.c.h.b16 %v867
    %v1045 = vunpack.c.l.b16 %v868
    %v1046 = vunpack.c.h.b16 %v868
    %v1047 = vunpack.c.l.b16 %v869
    %v1048 = vunpack.c.h.b16 %v869
    %v1049 = vunpack.c.l.b16 %v870
    %v1050 = vunpack.c.h.b16 %v870
    %v1051 = vunpack.c.l.b16 %v871
    %v1052 = vunpack.c.h.b16 %v871
    %v1053 = vunpack.c.l.b16 %v872
    %v1054 = vunpack.c.h.b16 %v872
    %v1055 = vunpack.c.l.b16 %v873
    %v1056 = vunpack.c.h.b16 %v873
    %v1057 = vunpack.c.l.b16 %v874
    %v1058 = vunpack.c.h.b16 %v874
    %v1059 = vunpack.c.l.b16 %v875
    %v1060 = vunpack.c.h.b16 %v875
    %v1061 = vunpack.c.l.b16 %v876
    %v1062 = vunpack.c.h.b16 %v876
    %v1063 = vunpack.c.l.b16 %v877
    %v1064 = vunpack.c.h.b16 %v877
    %v1065 = vunpack.c.l.b16 %v878
    %v1066 = vunpack.c.h.b16 %v878
    %v1067 = vunpack.c.l.b16 %v879
    %v1068 = vunpack.c.h.b16 %v879
    %v1069 = vunpack.c.l.b16 %v880
    %v1070 = vunpack.c.h.b16 %v880
    %v1071 = vunpack.c.l.b16 %v881
    %v1072 = vunpack.c.h.b16 %v881
    %v1073 = vunpack.c.l.b16 %v882
    %v1074 = vunpack.c.h.b16 %v882
    %v1075 = vunpack.c.l.b16 %v883
    %v1076 = vunpack.c.h.b16 %v883
    %v1077 = vunpack.c.l.b16 %v884
    %v1078 = vunpack.c.h.b16 %v884
    %v1079 = vunpack.c.l.b16 %v885
    %v1080 = vunpack.c.h.b16 %v885
    %v1081 = vunpack.c.l.b16 %v886
    %v1082 = vunpack.c.h.b16 %v886
    %v1083 = vunpack.c.l.b16 %v887
    %v1084 = vunpack.c.h.b16 %v887
    %v1085 = vunpack.c.l.b16 %v888
    %v1086 = vunpack.c.h.b16 %v888
    %v1087 = vunpack.c.l.b16 %v889
    %v1088 = vunpack.c.h.b16 %v889
    %v1089 = vunpack.c.l.b16 %v890
    %v1090 = vunpack.c.h.b16 %v890
    %v1091 = vunpack.c.l.b16 %v891
    %v1092 = vunpack.c.h.b16 %v891
    %v1093 = vunpack.c.l.b16 %v892
    %v1094 = vunpack.c.h.b16 %v892
    %v1095 = vpack.c.b16 %v971, %v967
    %v1096 = vpack.c.b16 %v972, %v968
    %v1097 = vpack.c.b16 %v973, %v969
    %v1098 = vpack.c.b16 %v974, %v970
    %v1099 = vpack.c.b16 %v979, %v975
    %v1100 = vpack.c.b16 %v980, %v976
    %v1101 = vpack.c.b16 %v981, %v977
    %v1102 = vpack.c.b16 %v982, %v978
    %v1103 = vpack.c.b16 %v987, %v983
    %v1104 = vpack.c.b16 %v988, %v984
    %v1105 = vpack.c.b16 %v989, %v985
    %v1106 = vpack.c.b16 %v990, %v986
    %v1107 = vpack.c.b16 %v995, %v991
    %v1108 = vpack.c.b16 %v996, %v992
    %v1109 = vpack.c.b16 %v997, %v993
    %v1110 = vpack.c.b16 %v998, %v994
    %v1111 = vpack.c.b16 %v1003, %v999
    %v1112 = vpack.c.b16 %v1004, %v1000
    %v1113 = vpack.c.b16 %v1005, %v1001
    %v1114 = vpack.c.b16 %v1006, %v1002
    %v1115 = vpack.c.b16 %v1011, %v1007
    %v1116 = vpack.c.b16 %v1012, %v1008
    %v1117 = vpack.c.b16 %v1013, %v1009
    %v1118 = vpack.c.b16 %v1014, %v1010
    %v1119 = vpack.c.b16 %v1019, %v1015
    %v1120 = vpack.c.b16 %v1020, %v1016
    %v1121 = vpack.c.b16 %v1021, %v1017
    %v1122 = vpack.c.b16 %v1022, %v1018
    %v1123 = vpack.c.b16 %v1027, %v1023
    %v1124 = vpack.c.b16 %v1028, %v1024
    %v1125 = vpack.c.b16 %v1029, %v1025
    %v1126 = vpack.c.b16 %v1030, %v1026
    %v1127 = vpack.c.b16 %v1035, %v1031
    %v1128 = vpack.c.b16 %v1036, %v1032
    %v1129 = vpack.c.b16 %v1037, %v1033
    %v1130 = vpack.c.b16 %v1038, %v1034
    %v1131 = vpack.c.b16 %v1043, %v1039
    %v1132 = vpack.c.b16 %v1044, %v1040
    %v1133 = vpack.c.b16 %v1045, %v1041
    %v1134 = vpack.c.b16 %v1046, %v1042
    %v1135 = vpack.c.b16 %v1051, %v1047
    %v1136 = vpack.c.b16 %v1052, %v1048
    %v1137 = vpack.c.b16 %v1053, %v1049
    %v1138 = vpack.c.b16 %v1054, %v1050
    %v1139 = vpack.c.b16 %v1059, %v1055
    %v1140 = vpack.c.b16 %v1060, %v1056
    %v1141 = vpack.c.b16 %v1061, %v1057
    %v1142 = vpack.c.b16 %v1062, %v1058
    %v1143 = vpack.c.b16 %v1067, %v1063
    %v1144 = vpack.c.b16 %v1068, %v1064
    %v1145 = vpack.c.b16 %v1069, %v1065
    %v1146 = vpack.c.b16 %v1070, %v1066
    %v1147 = vpack.c.b16 %v1075, %v1071
    %v1148 = vpack.c.b16 %v1076, %v1072
    %v1149 = vpack.c.b16 %v1077, %v1073
    %v1150 = vpack.c.b16 %v1078, %v1074
    %v1151 = vpack.c.b16 %v1083, %v1079
    %v1152 = vpack.c.b16 %v1084, %v1080
    %v1153 = vpack.c.b16 %v1085, %v1081
    %v1154 = vpack.c.b16 %v1086, %v1082
    %v1155 = vpack.c.b16 %v1091, %v1087
    %v1156 = vpack.c.b16 %v1092, %v1088
    %v1157 = vpack.c.b16 %v1093, %v1089
    %v1158 = vpack.c.b16 %v1094, %v1090
    %1223 = vmatpush.bf16.msra.mxu0 %v1123
    %1224 = vmatpush.bf16.msra.mxu0 %v1119
    %1225 = vmatpush.bf16.msra.mxu0 %v1115
    %1226 = vmatpush.bf16.msra.mxu0 %v1111
    %1227 = vmatpush.bf16.msra.mxu0 %v1107
    %1228 = vmatpush.bf16.msra.mxu0 %v1103
    %1229 = vmatpush.bf16.msra.mxu0 %v1099
    %1230 = vmatpush.bf16.msra.mxu0 %v1095
    %1231 = vmatmul.bf16.gmra.mxu0 %v827
    %v1232 = vpop.f32.mrf.mxu0
    %v1233 = vadd.f32 %v895, %v1232
    %v1234 = vpop.f32.mrf.mxu0
    %1235 = vdwg.mxu0
    %1236 = vmatpush.bf16.msra.mxu0 %v1155
    %1237 = vmatpush.bf16.msra.mxu0 %v1151
    %1238 = vmatpush.bf16.msra.mxu0 %v1147
    %1239 = vmatpush.bf16.msra.mxu0 %v1143
    %1240 = vmatpush.bf16.msra.mxu0 %v1139
    %1241 = vmatpush.bf16.msra.mxu0 %v1135
    %1242 = vmatpush.bf16.msra.mxu0 %v1131
    %1243 = vmatpush.bf16.msra.mxu0 %v1127
    %1244 = vmatmul.bf16.gmra.mxu0 %v828
    %v1245 = vpop.f32.mrf.mxu0
    %v1246 = vadd.f32 %v1233, %v1245
    %v1247 = vpop.f32.mrf.mxu0
    %1248 = vdwg.mxu0
    %1249 = vmatpush.bf16.msra.mxu0 %v1124
    %1250 = vmatpush.bf16.msra.mxu0 %v1120
    %1251 = vmatpush.bf16.msra.mxu0 %v1116
    %1252 = vmatpush.bf16.msra.mxu0 %v1112
    %1253 = vmatpush.bf16.msra.mxu0 %v1108
    %1254 = vmatpush.bf16.msra.mxu0 %v1104
    %1255 = vmatpush.bf16.msra.mxu0 %v1100
    %1256 = vmatpush.bf16.msra.mxu0 %v1096
    %1257 = vmatmul.bf16.gmra.mxu0 %v827
    %v1258 = vpop.f32.mrf.mxu0
    %v1259 = vadd.f32 %v896, %v1258
    %v1260 = vpop.f32.mrf.mxu0
    %1261 = vdwg.mxu0
    %1262 = vmatpush.bf16.msra.mxu0 %v1156
    %1263 = vmatpush.bf16.msra.mxu0 %v1152
    %1264 = vmatpush.bf16.msra.mxu0 %v1148
    %1265 = vmatpush.bf16.msra.mxu0 %v1144
    %1266 = vmatpush.bf16.msra.mxu0 %v1140
    %1267 = vmatpush.bf16.msra.mxu0 %v1136
    %1268 = vmatpush.bf16.msra.mxu0 %v1132
    %1269 = vmatpush.bf16.msra.mxu0 %v1128
    %1270 = vmatmul.bf16.gmra.mxu0 %v828
    %v1271 = vpop.f32.mrf.mxu0
    %v1272 = vadd.f32 %v1259, %v1271
    %v1273 = vpop.f32.mrf.mxu0
    %1274 = vdwg.mxu0
    %1275 = vmatpush.bf16.msra.mxu0 %v1125
    %1276 = vmatpush.bf16.msra.mxu0 %v1121
    %1277 = vmatpush.bf16.msra.mxu0 %v1117
    %1278 = vmatpush.bf16.msra.mxu0 %v1113
    %1279 = vmatpush.bf16.msra.mxu0 %v1109
    %1280 = vmatpush.bf16.msra.mxu0 %v1105
    %1281 = vmatpush.bf16.msra.mxu0 %v1101
    %1282 = vmatpush.bf16.msra.mxu0 %v1097
    %1283 = vmatmul.bf16.gmra.mxu0 %v827
    %v1284 = vpop.f32.mrf.mxu0
    %v1285 = vadd.f32 %v897, %v1284
    %v1286 = vpop.f32.mrf.mxu0
    %1287 = vdwg.mxu0
    %1288 = vmatpush.bf16.msra.mxu0 %v1157
    %1289 = vmatpush.bf16.msra.mxu0 %v1153
    %1290 = vmatpush.bf16.msra.mxu0 %v1149
    %1291 = vmatpush.bf16.msra.mxu0 %v1145
    %1292 = vmatpush.bf16.msra.mxu0 %v1141
    %1293 = vmatpush.bf16.msra.mxu0 %v1137
    %1294 = vmatpush.bf16.msra.mxu0 %v1133
    %1295 = vmatpush.bf16.msra.mxu0 %v1129
    %1296 = vmatmul.bf16.gmra.mxu0 %v828
    %v1297 = vpop.f32.mrf.mxu0
    %v1298 = vadd.f32 %v1285, %v1297
    %v1299 = vpop.f32.mrf.mxu0
    %1300 = vdwg.mxu0
    %1301 = vmatpush.bf16.msra.mxu0 %v1126
    %1302 = vmatpush.bf16.msra.mxu0 %v1122
    %1303 = vmatpush.bf16.msra.mxu0 %v1118
    %1304 = vmatpush.bf16.msra.mxu0 %v1114
    %1305 = vmatpush.bf16.msra.mxu0 %v1110
    %1306 = vmatpush.bf16.msra.mxu0 %v1106
    %1307 = vmatpush.bf16.msra.mxu0 %v1102
    %1308 = vmatpush.bf16.msra.mxu0 %v1098
    %1309 = vmatmul.bf16.gmra.mxu0 %v827
    %v1310 = vpop.f32.mrf.mxu0
    %v1311 = vadd.f32 %v898, %v1310
    %v1312 = vpop.f32.mrf.mxu0
    %1313 = vdwg.mxu0
    %1314 = vmatpush.bf16.msra.mxu0 %v1158
    %1315 = vmatpush.bf16.msra.mxu0 %v1154
    %1316 = vmatpush.bf16.msra.mxu0 %v1150
    %1317 = vmatpush.bf16.msra.mxu0 %v1146
    %1318 = vmatpush.bf16.msra.mxu0 %v1142
    %1319 = vmatpush.bf16.msra.mxu0 %v1138
    %1320 = vmatpush.bf16.msra.mxu0 %v1134
    %1321 = vmatpush.bf16.msra.mxu0 %v1130
    %1322 = vmatmul.bf16.gmra.mxu0 %v828
    %v1323 = vpop.f32.mrf.mxu0
    %v1324 = vadd.f32 %v1311, %v1323
    %v1325 = vpop.f32.mrf.mxu0
    %1326 = vdwg.mxu0
    %v1327 = vmax.f32 %v1246, 0.0
    %v1328 = vmax.f32 %v1272, 0.0
    %v1329 = vmax.f32 %v1298, 0.0
    %v1330 = vmax.f32 %v1324, 0.0
    %v1331 = vld [vmem:[%s12] sm:$0xff]
    %v1332 = vld [vmem:[%s12 + $0x8] sm:$0xff]
    %v1333 = vld [vmem:[%s12 + $0x10] sm:$0xff]
    %v1334 = vld [vmem:[%s12 + $0x18] sm:$0xff]
    %v1335 = vld [vmem:[%s12 + $0x20] sm:$0xff]
    %v1336 = vld [vmem:[%s12 + $0x28] sm:$0xff]
    %v1337 = vld [vmem:[%s12 + $0x30] sm:$0xff]
    %v1338 = vld [vmem:[%s12 + $0x38] sm:$0xff]
    %v1339 = vld [vmem:[%s12 + $0x40] sm:$0xff]
    %v1340 = vld [vmem:[%s12 + $0x48] sm:$0xff]
    %v1341 = vld [vmem:[%s12 + $0x50] sm:$0xff]
    %v1342 = vld [vmem:[%s12 + $0x58] sm:$0xff]
    %v1343 = vld [vmem:[%s12 + $0x60] sm:$0xff]
    %v1344 = vld [vmem:[%s12 + $0x68] sm:$0xff]
    %v1345 = vld [vmem:[%s12 + $0x70] sm:$0xff]
    %v1346 = vld [vmem:[%s12 + $0x78] sm:$0xff]
    %v1347 = vld [vmem:[%s12 + $0x80] sm:$0xff]
    %v1348 = vld [vmem:[%s12 + $0x88] sm:$0xff]
    %v1349 = vld [vmem:[%s12 + $0x90] sm:$0xff]
    %v1350 = vld [vmem:[%s12 + $0x98] sm:$0xff]
    %v1351 = vld [vmem:[%s12 + $0xa0] sm:$0xff]
    %v1352 = vld [vmem:[%s12 + $0xa8] sm:$0xff]
    %v1353 = vld [vmem:[%s12 + $0xb0] sm:$0xff]
    %v1354 = vld [vmem:[%s12 + $0xb8] sm:$0xff]
    %v1355 = vld [vmem:[%s12 + $0xc0] sm:$0xff]
    %v1356 = vld [vmem:[%s12 + $0xc8] sm:$0xff]
    %v1357 = vld [vmem:[%s12 + $0xd0] sm:$0xff]
    %v1358 = vld [vmem:[%s12 + $0xd8] sm:$0xff]
    %v1359 = vld [vmem:[%s12 + $0xe0] sm:$0xff]
    %v1360 = vld [vmem:[%s12 + $0xe8] sm:$0xff]
    %v1361 = vld [vmem:[%s12 + $0xf0] sm:$0xff]
    %v1362 = vld [vmem:[%s12 + $0xf8] sm:$0xff]
    %v1363 = vld [vmem:[%s12 + $0x100] sm:$0xff]
    %v1364 = vld [vmem:[%s12 + $0x108] sm:$0xff]
    %v1365 = vld [vmem:[%s12 + $0x110] sm:$0xff]
    %v1366 = vld [vmem:[%s12 + $0x118] sm:$0xff]
    %v1367 = vld [vmem:[%s12 + $0x120] sm:$0xff]
    %v1368 = vld [vmem:[%s12 + $0x128] sm:$0xff]
    %v1369 = vld [vmem:[%s12 + $0x130] sm:$0xff]
    %v1370 = vld [vmem:[%s12 + $0x138] sm:$0xff]
    %v1371 = vld [vmem:[%s12 + $0x140] sm:$0xff]
    %v1372 = vld [vmem:[%s12 + $0x148] sm:$0xff]
    %v1373 = vld [vmem:[%s12 + $0x150] sm:$0xff]
    %v1374 = vld [vmem:[%s12 + $0x158] sm:$0xff]
    %v1375 = vld [vmem:[%s12 + $0x160] sm:$0xff]
    %v1376 = vld [vmem:[%s12 + $0x168] sm:$0xff]
    %v1377 = vld [vmem:[%s12 + $0x170] sm:$0xff]
    %v1378 = vld [vmem:[%s12 + $0x178] sm:$0xff]
    %v1379 = vld [vmem:[%s12 + $0x180] sm:$0xff]
    %v1380 = vld [vmem:[%s12 + $0x188] sm:$0xff]
    %v1381 = vld [vmem:[%s12 + $0x190] sm:$0xff]
    %v1382 = vld [vmem:[%s12 + $0x198] sm:$0xff]
    %v1383 = vld [vmem:[%s12 + $0x1a0] sm:$0xff]
    %v1384 = vld [vmem:[%s12 + $0x1a8] sm:$0xff]
    %v1385 = vld [vmem:[%s12 + $0x1b0] sm:$0xff]
    %v1386 = vld [vmem:[%s12 + $0x1b8] sm:$0xff]
    %v1387 = vld [vmem:[%s12 + $0x1c0] sm:$0xff]
    %v1388 = vld [vmem:[%s12 + $0x1c8] sm:$0xff]
    %v1389 = vld [vmem:[%s12 + $0x1d0] sm:$0xff]
    %v1390 = vld [vmem:[%s12 + $0x1d8] sm:$0xff]
    %v1391 = vld [vmem:[%s12 + $0x1e0] sm:$0xff]
    %v1392 = vld [vmem:[%s12 + $0x1e8] sm:$0xff]
    %v1393 = vld [vmem:[%s12 + $0x1f0] sm:$0xff]
    %v1394 = vld [vmem:[%s12 + $0x1f8] sm:$0xff]
    %v1395 = vld [vmem:[%s13] sm:$0x1]
    %v1397 = vperm.slane %v1395, 0
    %1399 = vmatpush.msra.mxu0 %v1346
    %1400 = vmatpush.msra.mxu0 %v1345
    %1401 = vmatpush.msra.mxu0 %v1344
    %1402 = vmatpush.msra.mxu0 %v1343
    %1403 = vmatpush.msra.mxu0 %v1342
    %1404 = vmatpush.msra.mxu0 %v1341
    %1405 = vmatpush.msra.mxu0 %v1340
    %1406 = vmatpush.msra.mxu0 %v1339
    %1407 = vmatpush.msra.mxu0 %v1338
    %1408 = vmatpush.msra.mxu0 %v1337
    %1409 = vmatpush.msra.mxu0 %v1336
    %1410 = vmatpush.msra.mxu0 %v1335
    %1411 = vmatpush.msra.mxu0 %v1334
    %1412 = vmatpush.msra.mxu0 %v1333
    %1413 = vmatpush.msra.mxu0 %v1332
    %1414 = vmatpush.msra.mxu0 %v1331
    %1415 = vmatmul.f32.gmra.mxu0 %v1327
    %v1416 = vpop.f32.mrf.mxu0
    %v1417 = vadd.f32 %v1397, %v1416
    %1418 = vdwg.mxu0
    %1419 = vmatpush.msra.mxu0 %v1362
    %1420 = vmatpush.msra.mxu0 %v1361
    %1421 = vmatpush.msra.mxu0 %v1360
    %1422 = vmatpush.msra.mxu0 %v1359
    %1423 = vmatpush.msra.mxu0 %v1358
    %1424 = vmatpush.msra.mxu0 %v1357
    %1425 = vmatpush.msra.mxu0 %v1356
    %1426 = vmatpush.msra.mxu0 %v1355
    %1427 = vmatpush.msra.mxu0 %v1354
    %1428 = vmatpush.msra.mxu0 %v1353
    %1429 = vmatpush.msra.mxu0 %v1352
    %1430 = vmatpush.msra.mxu0 %v1351
    %1431 = vmatpush.msra.mxu0 %v1350
    %1432 = vmatpush.msra.mxu0 %v1349
    %1433 = vmatpush.msra.mxu0 %v1348
    %1434 = vmatpush.msra.mxu0 %v1347
    %1435 = vmatmul.f32.gmra.mxu0 %v1328
    %v1436 = vpop.f32.mrf.mxu0
    %v1437 = vadd.f32 %v1417, %v1436
    %1438 = vdwg.mxu0
    %1439 = vmatpush.msra.mxu0 %v1378
    %1440 = vmatpush.msra.mxu0 %v1377
    %1441 = vmatpush.msra.mxu0 %v1376
    %1442 = vmatpush.msra.mxu0 %v1375
    %1443 = vmatpush.msra.mxu0 %v1374
    %1444 = vmatpush.msra.mxu0 %v1373
    %1445 = vmatpush.msra.mxu0 %v1372
    %1446 = vmatpush.msra.mxu0 %v1371
    %1447 = vmatpush.msra.mxu0 %v1370
    %1448 = vmatpush.msra.mxu0 %v1369
    %1449 = vmatpush.msra.mxu0 %v1368
    %1450 = vmatpush.msra.mxu0 %v1367
    %1451 = vmatpush.msra.mxu0 %v1366
    %1452 = vmatpush.msra.mxu0 %v1365
    %1453 = vmatpush.msra.mxu0 %v1364
    %1454 = vmatpush.msra.mxu0 %v1363
    %1455 = vmatmul.f32.gmra.mxu0 %v1329
    %v1456 = vpop.f32.mrf.mxu0
    %v1457 = vadd.f32 %v1437, %v1456
    %1458 = vdwg.mxu0
    %1459 = vmatpush.msra.mxu0 %v1394
    %1460 = vmatpush.msra.mxu0 %v1393
    %1461 = vmatpush.msra.mxu0 %v1392
    %1462 = vmatpush.msra.mxu0 %v1391
    %1463 = vmatpush.msra.mxu0 %v1390
    %1464 = vmatpush.msra.mxu0 %v1389
    %1465 = vmatpush.msra.mxu0 %v1388
    %1466 = vmatpush.msra.mxu0 %v1387
    %1467 = vmatpush.msra.mxu0 %v1386
    %1468 = vmatpush.msra.mxu0 %v1385
    %1469 = vmatpush.msra.mxu0 %v1384
    %1470 = vmatpush.msra.mxu0 %v1383
    %1471 = vmatpush.msra.mxu0 %v1382
    %1472 = vmatpush.msra.mxu0 %v1381
    %1473 = vmatpush.msra.mxu0 %v1380
    %1474 = vmatpush.msra.mxu0 %v1379
    %1475 = vmatmul.f32.gmra.mxu0 %v1330
    %v1476 = vpop.f32.mrf.mxu0
    %v1477 = vadd.f32 %v1457, %v1476
    %1478 = vdwg.mxu0
    %vm1479 = vcmask 254976
    %1480 = vst.msk [vmem:[#allocation14] sm:$0x3] %vm1479, %v1477
    // Predicated region
    $region66: #{audio_embedding_forward.1} parent=1 // pred_check
      _
    $region67: #{audio_embedding_forward.1} parent=1 // pred_check_branch
      %1482 = sbr.rel (0) target = $region69
    $region68: #{audio_embedding_forward.1} parent=1 // pred_region
      %1484 = vsyncadd [#allocation11], 0
      %s1486 = sshll.u32 [#allocation14], 4
      %s1487 = int_to_ptr.vmem [resolvable:$true] %s1486
      %s1488 = sshll.u32 %s14, 4
      %s1489 = int_to_ptr.hbm [resolvable:$true] %s1488
      %1491 = dma.vmem_to_hbm [thread:$0]  %s1487, 32, %s1489, [#allocation11]
    $region69: #{audio_embedding_forward.1} parent=1 // pred_fallthru
      _
    // Predicated region
    $region70: #{audio_embedding_forward.1} parent=1 // pred_check
      _
    $region71: #{audio_embedding_forward.1} parent=1 // pred_check_branch
      %1493 = sbr.rel (0) target = $region73
    $region72: #{audio_embedding_forward.1} parent=1 // pred_region
      %1495 = dma.done [#allocation11], 32
    $region73: #{audio_embedding_forward.1} parent=1 // pred_fallthru
      _
    %1496 = vsyncpa [#allocation10], 1
    %1497 = vsyncpa [#allocation13], 1
    %1498 = vsyncpa [#allocation11], 1

</llo_original>
